<compile_context>
chip_gen: v5e
topology: v5e:2x2
jax: 0.10.0
libtpu: 0.0.40
codegen_flags: <defaults>
</compile_context>

<pallas_src>
import functools
import math

import jax
import jax.numpy as jnp
from jax.experimental import pallas as pl
from jax.experimental.pallas import tpu as pltpu


# ----------------------------- in-kernel helpers -----------------------------

def _layer_norm(v, a, b, eps=1e-6):
    # v: (rows, M), a/b: (1, M); unbiased std, eps added to std.
    # Exact division (not approx reciprocal) so the error does not compound
    # over the layer stack.
    mean = jnp.mean(v, axis=-1, keepdims=True)
    var = jnp.sum((v - mean) ** 2, axis=-1, keepdims=True) * (1.0 / (v.shape[-1] - 1))
    return a * (v - mean) / (jnp.sqrt(var) + eps) + b


def _softmax_last(s):
    m = jnp.max(s, axis=-1, keepdims=True)
    e = jnp.exp(s - m)
    return e * pl.reciprocal(jnp.sum(e, axis=-1, keepdims=True), approx=True)


# ----------------------------- fused encoder kernel --------------------------

def fused_encoder_kernel(x_ref, mask_ref,
                         wqkv_ref, bqkv_ref, wo_ref, bo_ref,
                         ln1a_ref, ln1b_ref, ln2a_ref, ln2b_ref,
                         w1_ref, b1_ref, w2_ref, b2_ref,
                         fa_ref, fb_ref,
                         out_ref, act_ref, *, num_heads):
    layer = pl.program_id(1)
    TB, S, M = x_ref.shape
    H = num_heads
    dk = M // H

    # Residual stream is resident in VMEM across the layer axis.
    # CORRECTNESS NOTE: this relies on the layer axis being the innermost grid
    # axis and staying "arbitrary"/sequential per batch block -- do not mark it
    # parallel or reorder the grid.
    @pl.when(layer == 0)
    def _():
        act_ref[...] = x_ref[...].reshape(TB * S, M)

    x = act_ref[...]                                   # (TB*S, M) f32

    # Additive attention bias from the mask: (TB, 1, S), 0 where attend, -1e9 where masked.
    bias = jnp.where(mask_ref[...] == 0.0, jnp.float32(-1e9), jnp.float32(0.0))

    # ---------------- sublayer 1: x + SelfAttn(LayerNorm(x)) ----------------
    xn = _layer_norm(x, ln1a_ref[0], ln1b_ref[0])                        # (TB*S, M) f32
    # Fused Q|K|V projection: single lane-dense matmul, N = 3M.
    # 1/sqrt(dk) is already folded into the q columns of wqkv/bqkv.
    qkv = jnp.dot(xn.astype(jnp.bfloat16), wqkv_ref[0],
                  preferred_element_type=jnp.float32) + bqkv_ref[0]      # (TB*S, 3M) f32

    def head(col_off, b, h):
        # static slice: batch-b rows, head-h columns of the q/k/v section
        return qkv[b * S:(b + 1) * S, col_off + h * dk: col_off + (h + 1) * dk]

    # (TB*H, S, dk) head-batched views; n = b*H + h (single leading batch dim
    # so the score/context einsums lower to plain batched dot_general).
    q_s = jnp.stack([head(0, b, h) for b in range(TB) for h in range(H)]
                    ).astype(jnp.bfloat16)
    k_s = jnp.stack([head(M, b, h) for b in range(TB) for h in range(H)]
                    ).astype(jnp.bfloat16)
    v_s = jnp.stack([head(2 * M, b, h) for b in range(TB) for h in range(H)]
                    ).astype(jnp.bfloat16)
    bias_s = jnp.stack([bias[b] for b in range(TB) for _ in range(H)])   # (TB*H, 1, S)

    scores = jnp.einsum("nqd,nkd->nqk", q_s, k_s,
                        preferred_element_type=jnp.float32) + bias_s     # (TB*H, S, S)
    p = _softmax_last(scores)                                            # f32
    ctx = jnp.einsum("nqk,nkd->nqd", p.astype(jnp.bfloat16), v_s,
                     preferred_element_type=jnp.float32)                 # (TB*H, S, dk)

    # Reassemble context to (TB*S, M) and use the unsplit (M, M) Wo so the head
    # reduction happens inside the MXU contraction (no (H, S, M) intermediate).
    ctx2d = jnp.concatenate(
        [jnp.concatenate([ctx[b * H + h] for h in range(H)], axis=-1)
         for b in range(TB)], axis=0)                                    # (TB*S, M) f32
    attn_out = jnp.dot(ctx2d.astype(jnp.bfloat16), wo_ref[0],
                       preferred_element_type=jnp.float32) + bo_ref[0]   # (TB*S, M)
    y = x + attn_out                                                     # dropout = identity

    # ---------------- sublayer 2: y + FFN(LayerNorm(y)) ----------------------
    yn = _layer_norm(y, ln2a_ref[0], ln2b_ref[0])
    h1 = jnp.maximum(jnp.dot(yn.astype(jnp.bfloat16), w1_ref[0],
                             preferred_element_type=jnp.float32) + b1_ref[0], 0.0)
    ff = jnp.dot(h1.astype(jnp.bfloat16), w2_ref[0],
                 preferred_element_type=jnp.float32) + b2_ref[0]
    z = y + ff

    act_ref[...] = z

    # Final LayerNorm + single writeback after the last layer.
    @pl.when(layer == pl.num_programs(1) - 1)
    def _():
        out_ref[...] = _layer_norm(z, fa_ref[...], fb_ref[...]).reshape(TB, S, M)


# ----------------------------- host-side packing ------------------------------

_WEIGHT_ORDER = ("wqkv", "bqkv", "wo", "bo",
                 "ln1a", "ln1b", "ln2a", "ln2b",
                 "w1", "b1", "w2", "b2")


def pack_params(layer_params, num_heads):
    """Stack per-layer params along a leading layer axis; fuse Wq|Wk|Wv and
    fold 1/sqrt(dk) into the q columns (weights + bias) before the bf16 cast."""

    def stack(key):
        return jnp.stack([p[key] for p in layer_params], axis=0)

    wq = stack("wq")                         # (N, M, M)
    _, M, _ = wq.shape
    dk = M // num_heads
    scale = jnp.float32(1.0 / math.sqrt(dk))

    wqkv = jnp.concatenate([wq * scale, stack("wk"), stack("wv")], axis=-1)   # (N, M, 3M)
    bqkv = jnp.concatenate([stack("bq") * scale, stack("bk"), stack("bv")],
                           axis=-1)                                           # (N, 1, 3M)

    return {
        "wqkv": wqkv.astype(jnp.bfloat16),
        "bqkv": bqkv.astype(jnp.float32),
        "wo": stack("wo").astype(jnp.bfloat16), "bo": stack("bo"),
        "ln1a": stack("ln1a"), "ln1b": stack("ln1b"),
        "ln2a": stack("ln2a"), "ln2b": stack("ln2b"),
        "w1": stack("w1").astype(jnp.bfloat16), "b1": stack("b1"),
        "w2": stack("w2").astype(jnp.bfloat16), "b2": stack("b2"),
    }


# ----------------------------- wrapper -----------------------------------------

def encoder_forward(x, mask, layer_params, final_a, final_b, num_heads,
                    batch_block=None):
    B, S, M = x.shape
    assert M % num_heads == 0
    packed = pack_params(layer_params, num_heads)
    n_layers = packed["wqkv"].shape[0]
    weights = [packed[name] for name in _WEIGHT_ORDER]

    # Batch blocking: each grid step processes TB batch rows per layer, so the
    # stacked layer weights are re-streamed from HBM only B/TB times.
    if batch_block is None:
        batch_block = max(tb for tb in range(1, min(B, 8) + 1) if B % tb == 0)
    TB = batch_block
    assert B % TB == 0

    def per_layer_spec(arr):
        return pl.BlockSpec((1,) + arr.shape[1:], lambda b, l: (l, 0, 0))

    in_specs = (
        [pl.BlockSpec((TB, S, M), lambda b, l: (b, 0, 0)),       # x (resident per b-block)
         pl.BlockSpec((TB, 1, S), lambda b, l: (b, 0, 0))]       # mask
        + [per_layer_spec(w) for w in weights]                   # streamed per layer
        + [pl.BlockSpec((1, M), lambda b, l: (0, 0)),            # final norm a (resident)
           pl.BlockSpec((1, M), lambda b, l: (0, 0))]            # final norm b (resident)
    )

    # Explicit scoped-VMEM budget: double-buffered per-layer weight block +
    # activation blocks + resident residual scratch + headroom for the
    # attention intermediates.  (TODO(synk): at real model sizes K-tile the
    # weights / flash-tile attention instead of just raising the limit.)
    itemsize = lambda a: jnp.dtype(a.dtype).itemsize
    weight_block_bytes = sum(math.prod(w.shape[1:]) * itemsize(w) for w in weights)
    act_block_bytes = TB * S * M * 4
    est = (2 * weight_block_bytes + 3 * act_block_bytes
           + 2 * TB * S * 4 + (8 << 20))
    vmem_limit = int(min(max(est, 32 << 20), 96 << 20))

    return pl.pallas_call(
        functools.partial(fused_encoder_kernel, num_heads=num_heads),
        out_shape=jax.ShapeDtypeStruct((B, S, M), jnp.float32),
        grid_spec=pltpu.PrefetchScalarGridSpec(
            num_scalar_prefetch=0,
            grid=(B // TB, n_layers),
            in_specs=in_specs,
            out_specs=pl.BlockSpec((TB, S, M), lambda b, l: (b, 0, 0)),
            scratch_shapes=[pltpu.VMEM((TB * S, M), jnp.float32)],
        ),
        compiler_params=pltpu.CompilerParams(
            dimension_semantics=("parallel", "arbitrary"),
            vmem_limit_bytes=vmem_limit),
    )(x, mask, *weights, final_a, final_b)


# ----------------------------- parameter init ----------------------------------

def init_layer_params(key, d_model, d_ff):
    ks = jax.random.split(key, 8)
    scale = 0.1

    def w(k, shape):
        return (scale * jax.random.normal(k, shape)).astype(jnp.float32)

    return {
        "wq": w(ks[0], (d_model, d_model)), "bq": jnp.zeros((1, d_model), jnp.float32),
        "wk": w(ks[1], (d_model, d_model)), "bk": jnp.zeros((1, d_model), jnp.float32),
        "wv": w(ks[2], (d_model, d_model)), "bv": jnp.zeros((1, d_model), jnp.float32),
        "wo": w(ks[3], (d_model, d_model)), "bo": jnp.zeros((1, d_model), jnp.float32),
        "ln1a": jnp.ones((1, d_model), jnp.float32),
        "ln1b": jnp.zeros((1, d_model), jnp.float32),
        "ln2a": jnp.ones((1, d_model), jnp.float32),
        "ln2b": jnp.zeros((1, d_model), jnp.float32),
        "w1": w(ks[4], (d_model, d_ff)), "b1": jnp.zeros((1, d_ff), jnp.float32),
        "w2": w(ks[5], (d_ff, d_model)), "b2": jnp.zeros((1, d_model), jnp.float32),
    }


# ----------------------------- pure-JAX reference (f32) ------------------------

def _ref_layer_norm(v, a, b, eps=1e-6):
    mean = jnp.mean(v, axis=-1, keepdims=True)
    var = jnp.sum((v - mean) ** 2, axis=-1, keepdims=True) / (v.shape[-1] - 1)
    return a * (v - mean) / (jnp.sqrt(var) + eps) + b


def encoder_reference(x, mask, layer_params, final_a, final_b, num_heads):
    B, S, M = x.shape
    H = num_heads
    dk = M // H
    for p in layer_params:
        xn = _ref_layer_norm(x, p["ln1a"], p["ln1b"])
        q = xn @ p["wq"] + p["bq"]
        k = xn @ p["wk"] + p["bk"]
        v = xn @ p["wv"] + p["bv"]

        def split(t):
            return t.reshape(B, S, H, dk).transpose(0, 2, 1, 3)

        qh, kh, vh = split(q), split(k), split(v)
        scores = jnp.einsum("bhqd,bhkd->bhqk", qh, kh) / math.sqrt(dk)
        scores = jnp.where(mask[:, None, :, :] == 0.0, -1e9, scores)
        pattn = jax.nn.softmax(scores, axis=-1)
        ctx = jnp.einsum("bhqk,bhkd->bhqd", pattn, vh)
        ctx = ctx.transpose(0, 2, 1, 3).reshape(B, S, M)
        x = x + (ctx @ p["wo"] + p["bo"])

        yn = _ref_layer_norm(x, p["ln2a"], p["ln2b"])
        x = x + (jnp.maximum(yn @ p["w1"] + p["b1"], 0.0) @ p["w2"] + p["b2"])
    return _ref_layer_norm(x, final_a, final_b)


# ----------------------------- main ---------------------------------------------

if __name__ == "__main__":
    B, S, M = 2, 8, 32          # batch, sequence, d_model
    H = 4                       # attention heads (d_k = 8)
    D_FF = 64
    N_LAYERS = 2

    root = jax.random.PRNGKey(0)
    k_x, k_layers = jax.random.split(root)

    x = jax.random.normal(k_x, (B, S, M), dtype=jnp.float32)

    # mask: (B, 1, S); mask out the last two key positions of batch element 1
    mask = jnp.ones((B, 1, S), dtype=jnp.float32)
    mask = mask.at[1, 0, S - 2:].set(0.0)

    layer_keys = jax.random.split(k_layers, N_LAYERS)
    layer_params = [init_layer_params(k, M, D_FF) for k in layer_keys]
    final_a = jnp.ones((1, M), jnp.float32)
    final_b = jnp.zeros((1, M), jnp.float32)

    out = encoder_forward(x, mask, layer_params, final_a, final_b, num_heads=H)
    out = jax.block_until_ready(out)

    assert out.shape == (B, S, M) and out.dtype == jnp.float32
    assert bool(jnp.all(jnp.isfinite(out)))

    # Loose check vs. f32 reference (kernel uses bf16 matmuls + approx softmax recip).
    ref = encoder_reference(x, mask, layer_params, final_a, final_b, num_heads=H)
    assert float(jnp.max(jnp.abs(out - ref))) < 0.25

    print("KERNEL_OK")
</pallas_src>

<mosaic_0001>
module attributes {stable_mosaic.version = 11 : i64} {
  func.func @fused_encoder_kernel(%arg0: i32, %arg1: i32, %arg2: memref<2x8x32xf32, #tpu.memory_space<vmem>>, %arg3: memref<2x1x8xf32, #tpu.memory_space<vmem>>, %arg4: memref<1x32x96xbf16, #tpu.memory_space<vmem>>, %arg5: memref<1x1x96xf32, #tpu.memory_space<vmem>>, %arg6: memref<1x32x32xbf16, #tpu.memory_space<vmem>>, %arg7: memref<1x1x32xf32, #tpu.memory_space<vmem>>, %arg8: memref<1x1x32xf32, #tpu.memory_space<vmem>>, %arg9: memref<1x1x32xf32, #tpu.memory_space<vmem>>, %arg10: memref<1x1x32xf32, #tpu.memory_space<vmem>>, %arg11: memref<1x1x32xf32, #tpu.memory_space<vmem>>, %arg12: memref<1x32x64xbf16, #tpu.memory_space<vmem>>, %arg13: memref<1x1x64xf32, #tpu.memory_space<vmem>>, %arg14: memref<1x64x32xbf16, #tpu.memory_space<vmem>>, %arg15: memref<1x1x32xf32, #tpu.memory_space<vmem>>, %arg16: memref<1x32xf32, #tpu.memory_space<vmem>>, %arg17: memref<1x32xf32, #tpu.memory_space<vmem>>, %arg18: memref<2x8x32xf32, #tpu.memory_space<vmem>>, %arg19: memref<16x32xf32, #tpu.memory_space<vmem>>) attributes {dimension_semantics = [#tpu.dimension_semantics<parallel>, #tpu.dimension_semantics<arbitrary>], iteration_bounds = array<i64: 1, 2>, scalar_prefetch = 0 : i64, scratch_operands = 1 : i64, tpu.core_type = #tpu.core_type<tc>, window_params = [{transform_indices = @transform_0, window_bounds = array<i64: 2, 8, 32>}, {transform_indices = @transform_1, window_bounds = array<i64: 2, 1, 8>}, {transform_indices = @transform_2, window_bounds = array<i64: 1, 32, 96>}, {transform_indices = @transform_3, window_bounds = array<i64: 1, 1, 96>}, {transform_indices = @transform_4, window_bounds = array<i64: 1, 32, 32>}, {transform_indices = @transform_5, window_bounds = array<i64: 1, 1, 32>}, {transform_indices = @transform_6, window_bounds = array<i64: 1, 1, 32>}, {transform_indices = @transform_7, window_bounds = array<i64: 1, 1, 32>}, {transform_indices = @transform_8, window_bounds = array<i64: 1, 1, 32>}, {transform_indices = @transform_9, window_bounds = array<i64: 1, 1, 32>}, {transform_indices = @transform_10, window_bounds = array<i64: 1, 32, 64>}, {transform_indices = @transform_11, window_bounds = array<i64: 1, 1, 64>}, {transform_indices = @transform_12, window_bounds = array<i64: 1, 64, 32>}, {transform_indices = @transform_13, window_bounds = array<i64: 1, 1, 32>}, {pipeline_mode = #tpu.pipeline_mode<synchronous>, transform_indices = @transform_14, window_bounds = array<i64: 1, 32>}, {pipeline_mode = #tpu.pipeline_mode<synchronous>, transform_indices = @transform_15, window_bounds = array<i64: 1, 32>}, {transform_indices = @transform_16, window_bounds = array<i64: 2, 8, 32>}]} {
    %c0_i32 = arith.constant 0 : i32
    %0 = arith.cmpi eq, %arg1, %c0_i32 : i32
    %1 = arith.extui %0 : i1 to i32
    %c0_i32_0 = arith.constant 0 : i32
    %2 = arith.cmpi ne, %1, %c0_i32_0 : i32
    scf.if %2 {
      %c0_65 = arith.constant 0 : index
      %c0_66 = arith.constant 0 : index
      %c0_67 = arith.constant 0 : index
      %215 = vector.load %arg2[%c0_65, %c0_66, %c0_67] : memref<2x8x32xf32, #tpu.memory_space<vmem>>, vector<2x8x32xf32>
      %216 = vector.shape_cast %215 : vector<2x8x32xf32> to vector<16x32xf32>
      %c0_68 = arith.constant 0 : index
      %c0_69 = arith.constant 0 : index
      %217 = vector.load %arg19[%c0_68, %c0_69] : memref<16x32xf32, #tpu.memory_space<vmem>>, vector<16x32xf32>
      tpu.vector_store %arg19[%c0_68, %c0_69], %216 {strides = array<i32>} : memref<16x32xf32, #tpu.memory_space<vmem>>, vector<16x32xf32>,
    } else {
    }
    %c0 = arith.constant 0 : index
    %c0_1 = arith.constant 0 : index
    %3 = vector.load %arg19[%c0, %c0_1] : memref<16x32xf32, #tpu.memory_space<vmem>>, vector<16x32xf32>
    %c0_2 = arith.constant 0 : index
    %c0_3 = arith.constant 0 : index
    %c0_4 = arith.constant 0 : index
    %4 = vector.load %arg3[%c0_2, %c0_3, %c0_4] : memref<2x1x8xf32, #tpu.memory_space<vmem>>, vector<2x1x8xf32>
    %cst = arith.constant 0.000000e+00 : f32
    %5 = vector.broadcast %cst : f32 to vector<2x1x8xf32>
    %6 = arith.cmpf oeq, %4, %5 : vector<2x1x8xf32>
    %cst_5 = arith.constant -1.000000e+09 : f32
    %cst_6 = arith.constant 0.000000e+00 : f32
    %7 = vector.broadcast %cst_5 : f32 to vector<2x1x8xf32>
    %8 = vector.broadcast %cst_6 : f32 to vector<2x1x8xf32>
    %9 = arith.select %6, %7, %8 : vector<2x1x8xi1>, vector<2x1x8xf32>
    %c0_7 = arith.constant 0 : index
    %c0_8 = arith.constant 0 : index
    %c0_9 = arith.constant 0 : index
    %10 = vector.load %arg8[%c0_7, %c0_8, %c0_9] : memref<1x1x32xf32, #tpu.memory_space<vmem>>, vector<1x1x32xf32>
    %11 = vector.shape_cast %10 : vector<1x1x32xf32> to vector<1x32xf32>
    %c0_10 = arith.constant 0 : index
    %c0_11 = arith.constant 0 : index
    %c0_12 = arith.constant 0 : index
    %12 = vector.load %arg9[%c0_10, %c0_11, %c0_12] : memref<1x1x32xf32, #tpu.memory_space<vmem>>, vector<1x1x32xf32>
    %13 = vector.shape_cast %12 : vector<1x1x32xf32> to vector<1x32xf32>
    %cst_13 = arith.constant dense<0.000000e+00> : vector<16xf32>
    %14 = vector.multi_reduction <add>, %3, %cst_13 [1] : vector<16x32xf32> to vector<16xf32>
    %15 = vector.shape_cast %14 : vector<16xf32> to vector<16x1xf32>
    %cst_14 = arith.constant 3.200000e+01 : f32
    %16 = vector.broadcast %cst_14 : f32 to vector<16x1xf32>
    %17 = arith.divf %15, %16 : vector<16x1xf32>
    %18 = vector.broadcast %17 : vector<16x1xf32> to vector<16x32xf32>
    %19 = arith.subf %3, %18 : vector<16x32xf32>
    %20 = arith.mulf %19, %19 : vector<16x32xf32>
    %cst_15 = arith.constant dense<0.000000e+00> : vector<16xf32>
    %21 = vector.multi_reduction <add>, %20, %cst_15 [1] : vector<16x32xf32> to vector<16xf32>
    %22 = vector.shape_cast %21 : vector<16xf32> to vector<16x1xf32>
    %cst_16 = arith.constant 0.0322580636 : f32
    %23 = vector.broadcast %cst_16 : f32 to vector<16x1xf32>
    %24 = arith.mulf %22, %23 : vector<16x1xf32>
    %25 = vector.broadcast %17 : vector<16x1xf32> to vector<16x32xf32>
    %26 = arith.subf %3, %25 : vector<16x32xf32>
    %27 = vector.broadcast %11 : vector<1x32xf32> to vector<16x32xf32>
    %28 = arith.mulf %27, %26 : vector<16x32xf32>
    %29 = math.sqrt %24 : vector<16x1xf32>
    %cst_17 = arith.constant 9.99999997E-7 : f32
    %30 = vector.broadcast %cst_17 : f32 to vector<16x1xf32>
    %31 = arith.addf %29, %30 : vector<16x1xf32>
    %32 = vector.broadcast %31 : vector<16x1xf32> to vector<16x32xf32>
    %33 = arith.divf %28, %32 : vector<16x32xf32>
    %34 = vector.broadcast %13 : vector<1x32xf32> to vector<16x32xf32>
    %35 = arith.addf %33, %34 : vector<16x32xf32>
    %36 = arith.truncf %35 : vector<16x32xf32> to vector<16x32xbf16>
    %c0_18 = arith.constant 0 : index
    %c0_19 = arith.constant 0 : index
    %c0_20 = arith.constant 0 : index
    %37 = vector.load %arg4[%c0_18, %c0_19, %c0_20] : memref<1x32x96xbf16, #tpu.memory_space<vmem>>, vector<1x32x96xbf16>
    %38 = vector.shape_cast %37 : vector<1x32x96xbf16> to vector<32x96xbf16>
    %cst_21 = arith.constant dense<0.000000e+00> : vector<16x96xf32>
    %39 = tpu.matmul %36, %38, %cst_21 {dimension_numbers = #tpu.dot_dimension_numbers<[1], [0], [0], [1], [0, 0, 1, 1], [], []>} : vector<16x32xbf16>, vector<32x96xbf16>, vector<16x96xf32> -> vector<16x96xf32>
    %c0_22 = arith.constant 0 : index
    %c0_23 = arith.constant 0 : index
    %c0_24 = arith.constant 0 : index
    %40 = vector.load %arg5[%c0_22, %c0_23, %c0_24] : memref<1x1x96xf32, #tpu.memory_space<vmem>>, vector<1x1x96xf32>
    %41 = vector.shape_cast %40 : vector<1x1x96xf32> to vector<1x96xf32>
    %42 = vector.broadcast %41 : vector<1x96xf32> to vector<16x96xf32>
    %43 = arith.addf %39, %42 : vector<16x96xf32>
    %44 = vector.extract_strided_slice %43 {offsets = [0, 0], sizes = [8, 8], strides = [1, 1]} : vector<16x96xf32> to vector<8x8xf32>
    %45 = vector.extract_strided_slice %43 {offsets = [0, 8], sizes = [8, 8], strides = [1, 1]} : vector<16x96xf32> to vector<8x8xf32>
    %46 = vector.extract_strided_slice %43 {offsets = [0, 16], sizes = [8, 8], strides = [1, 1]} : vector<16x96xf32> to vector<8x8xf32>
    %47 = vector.extract_strided_slice %43 {offsets = [0, 24], sizes = [8, 8], strides = [1, 1]} : vector<16x96xf32> to vector<8x8xf32>
    %48 = vector.extract_strided_slice %43 {offsets = [8, 0], sizes = [8, 8], strides = [1, 1]} : vector<16x96xf32> to vector<8x8xf32>
    %49 = vector.extract_strided_slice %43 {offsets = [8, 8], sizes = [8, 8], strides = [1, 1]} : vector<16x96xf32> to vector<8x8xf32>
    %50 = vector.extract_strided_slice %43 {offsets = [8, 16], sizes = [8, 8], strides = [1, 1]} : vector<16x96xf32> to vector<8x8xf32>
    %51 = vector.extract_strided_slice %43 {offsets = [8, 24], sizes = [8, 8], strides = [1, 1]} : vector<16x96xf32> to vector<8x8xf32>
    %52 = vector.shape_cast %44 : vector<8x8xf32> to vector<1x8x8xf32>
    %53 = vector.shape_cast %45 : vector<8x8xf32> to vector<1x8x8xf32>
    %54 = vector.shape_cast %46 : vector<8x8xf32> to vector<1x8x8xf32>
    %55 = vector.shape_cast %47 : vector<8x8xf32> to vector<1x8x8xf32>
    %56 = vector.shape_cast %48 : vector<8x8xf32> to vector<1x8x8xf32>
    %57 = vector.shape_cast %49 : vector<8x8xf32> to vector<1x8x8xf32>
    %58 = vector.shape_cast %50 : vector<8x8xf32> to vector<1x8x8xf32>
    %59 = vector.shape_cast %51 : vector<8x8xf32> to vector<1x8x8xf32>
    %60 = tpu.concatenate %52, %53, %54, %55, %56, %57, %58, %59 in 0 : vector<1x8x8xf32>, vector<1x8x8xf32>, vector<1x8x8xf32>, vector<1x8x8xf32>, vector<1x8x8xf32>, vector<1x8x8xf32>, vector<1x8x8xf32>, vector<1x8x8xf32> -> vector<8x8x8xf32>
    %61 = arith.truncf %60 : vector<8x8x8xf32> to vector<8x8x8xbf16>
    %62 = vector.extract_strided_slice %43 {offsets = [0, 32], sizes = [8, 8], strides = [1, 1]} : vector<16x96xf32> to vector<8x8xf32>
    %63 = vector.extract_strided_slice %43 {offsets = [0, 40], sizes = [8, 8], strides = [1, 1]} : vector<16x96xf32> to vector<8x8xf32>
    %64 = vector.extract_strided_slice %43 {offsets = [0, 48], sizes = [8, 8], strides = [1, 1]} : vector<16x96xf32> to vector<8x8xf32>
    %65 = vector.extract_strided_slice %43 {offsets = [0, 56], sizes = [8, 8], strides = [1, 1]} : vector<16x96xf32> to vector<8x8xf32>
    %66 = vector.extract_strided_slice %43 {offsets = [8, 32], sizes = [8, 8], strides = [1, 1]} : vector<16x96xf32> to vector<8x8xf32>
    %67 = vector.extract_strided_slice %43 {offsets = [8, 40], sizes = [8, 8], strides = [1, 1]} : vector<16x96xf32> to vector<8x8xf32>
    %68 = vector.extract_strided_slice %43 {offsets = [8, 48], sizes = [8, 8], strides = [1, 1]} : vector<16x96xf32> to vector<8x8xf32>
    %69 = vector.extract_strided_slice %43 {offsets = [8, 56], sizes = [8, 8], strides = [1, 1]} : vector<16x96xf32> to vector<8x8xf32>
    %70 = vector.shape_cast %62 : vector<8x8xf32> to vector<1x8x8xf32>
    %71 = vector.shape_cast %63 : vector<8x8xf32> to vector<1x8x8xf32>
    %72 = vector.shape_cast %64 : vector<8x8xf32> to vector<1x8x8xf32>
    %73 = vector.shape_cast %65 : vector<8x8xf32> to vector<1x8x8xf32>
    %74 = vector.shape_cast %66 : vector<8x8xf32> to vector<1x8x8xf32>
    %75 = vector.shape_cast %67 : vector<8x8xf32> to vector<1x8x8xf32>
    %76 = vector.shape_cast %68 : vector<8x8xf32> to vector<1x8x8xf32>
    %77 = vector.shape_cast %69 : vector<8x8xf32> to vector<1x8x8xf32>
    %78 = tpu.concatenate %70, %71, %72, %73, %74, %75, %76, %77 in 0 : vector<1x8x8xf32>, vector<1x8x8xf32>, vector<1x8x8xf32>, vector<1x8x8xf32>, vector<1x8x8xf32>, vector<1x8x8xf32>, vector<1x8x8xf32>, vector<1x8x8xf32> -> vector<8x8x8xf32>
    %79 = arith.truncf %78 : vector<8x8x8xf32> to vector<8x8x8xbf16>
    %80 = vector.extract_strided_slice %43 {offsets = [0, 64], sizes = [8, 8], strides = [1, 1]} : vector<16x96xf32> to vector<8x8xf32>
    %81 = vector.extract_strided_slice %43 {offsets = [0, 72], sizes = [8, 8], strides = [1, 1]} : vector<16x96xf32> to vector<8x8xf32>
    %82 = vector.extract_strided_slice %43 {offsets = [0, 80], sizes = [8, 8], strides = [1, 1]} : vector<16x96xf32> to vector<8x8xf32>
    %83 = vector.extract_strided_slice %43 {offsets = [0, 88], sizes = [8, 8], strides = [1, 1]} : vector<16x96xf32> to vector<8x8xf32>
    %84 = vector.extract_strided_slice %43 {offsets = [8, 64], sizes = [8, 8], strides = [1, 1]} : vector<16x96xf32> to vector<8x8xf32>
    %85 = vector.extract_strided_slice %43 {offsets = [8, 72], sizes = [8, 8], strides = [1, 1]} : vector<16x96xf32> to vector<8x8xf32>
    %86 = vector.extract_strided_slice %43 {offsets = [8, 80], sizes = [8, 8], strides = [1, 1]} : vector<16x96xf32> to vector<8x8xf32>
    %87 = vector.extract_strided_slice %43 {offsets = [8, 88], sizes = [8, 8], strides = [1, 1]} : vector<16x96xf32> to vector<8x8xf32>
    %88 = vector.shape_cast %80 : vector<8x8xf32> to vector<1x8x8xf32>
    %89 = vector.shape_cast %81 : vector<8x8xf32> to vector<1x8x8xf32>
    %90 = vector.shape_cast %82 : vector<8x8xf32> to vector<1x8x8xf32>
    %91 = vector.shape_cast %83 : vector<8x8xf32> to vector<1x8x8xf32>
    %92 = vector.shape_cast %84 : vector<8x8xf32> to vector<1x8x8xf32>
    %93 = vector.shape_cast %85 : vector<8x8xf32> to vector<1x8x8xf32>
    %94 = vector.shape_cast %86 : vector<8x8xf32> to vector<1x8x8xf32>
    %95 = vector.shape_cast %87 : vector<8x8xf32> to vector<1x8x8xf32>
    %96 = tpu.concatenate %88, %89, %90, %91, %92, %93, %94, %95 in 0 : vector<1x8x8xf32>, vector<1x8x8xf32>, vector<1x8x8xf32>, vector<1x8x8xf32>, vector<1x8x8xf32>, vector<1x8x8xf32>, vector<1x8x8xf32>, vector<1x8x8xf32> -> vector<8x8x8xf32>
    %97 = arith.truncf %96 : vector<8x8x8xf32> to vector<8x8x8xbf16>
    %98 = vector.extract_strided_slice %9 {offsets = [0, 0, 0], sizes = [1, 1, 8], strides = [1, 1, 1]} : vector<2x1x8xf32> to vector<1x1x8xf32>
    %99 = vector.shape_cast %98 : vector<1x1x8xf32> to vector<1x8xf32>
    %100 = vector.extract_strided_slice %9 {offsets = [0, 0, 0], sizes = [1, 1, 8], strides = [1, 1, 1]} : vector<2x1x8xf32> to vector<1x1x8xf32>
    %101 = vector.shape_cast %100 : vector<1x1x8xf32> to vector<1x8xf32>
    %102 = vector.extract_strided_slice %9 {offsets = [0, 0, 0], sizes = [1, 1, 8], strides = [1, 1, 1]} : vector<2x1x8xf32> to vector<1x1x8xf32>
    %103 = vector.shape_cast %102 : vector<1x1x8xf32> to vector<1x8xf32>
    %104 = vector.extract_strided_slice %9 {offsets = [0, 0, 0], sizes = [1, 1, 8], strides = [1, 1, 1]} : vector<2x1x8xf32> to vector<1x1x8xf32>
    %105 = vector.shape_cast %104 : vector<1x1x8xf32> to vector<1x8xf32>
    %106 = vector.extract_strided_slice %9 {offsets = [1, 0, 0], sizes = [1, 1, 8], strides = [1, 1, 1]} : vector<2x1x8xf32> to vector<1x1x8xf32>
    %107 = vector.shape_cast %106 : vector<1x1x8xf32> to vector<1x8xf32>
    %108 = vector.extract_strided_slice %9 {offsets = [1, 0, 0], sizes = [1, 1, 8], strides = [1, 1, 1]} : vector<2x1x8xf32> to vector<1x1x8xf32>
    %109 = vector.shape_cast %108 : vector<1x1x8xf32> to vector<1x8xf32>
    %110 = vector.extract_strided_slice %9 {offsets = [1, 0, 0], sizes = [1, 1, 8], strides = [1, 1, 1]} : vector<2x1x8xf32> to vector<1x1x8xf32>
    %111 = vector.shape_cast %110 : vector<1x1x8xf32> to vector<1x8xf32>
    %112 = vector.extract_strided_slice %9 {offsets = [1, 0, 0], sizes = [1, 1, 8], strides = [1, 1, 1]} : vector<2x1x8xf32> to vector<1x1x8xf32>
    %113 = vector.shape_cast %112 : vector<1x1x8xf32> to vector<1x8xf32>
    %114 = vector.shape_cast %99 : vector<1x8xf32> to vector<1x1x8xf32>
    %115 = vector.shape_cast %101 : vector<1x8xf32> to vector<1x1x8xf32>
    %116 = vector.shape_cast %103 : vector<1x8xf32> to vector<1x1x8xf32>
    %117 = vector.shape_cast %105 : vector<1x8xf32> to vector<1x1x8xf32>
    %118 = vector.shape_cast %107 : vector<1x8xf32> to vector<1x1x8xf32>
    %119 = vector.shape_cast %109 : vector<1x8xf32> to vector<1x1x8xf32>
    %120 = vector.shape_cast %111 : vector<1x8xf32> to vector<1x1x8xf32>
    %121 = vector.shape_cast %113 : vector<1x8xf32> to vector<1x1x8xf32>
    %122 = tpu.concatenate %114, %115, %116, %117, %118, %119, %120, %121 in 0 : vector<1x1x8xf32>, vector<1x1x8xf32>, vector<1x1x8xf32>, vector<1x1x8xf32>, vector<1x1x8xf32>, vector<1x1x8xf32>, vector<1x1x8xf32>, vector<1x1x8xf32> -> vector<8x1x8xf32>
    "tpu.trace_start"() <{level = 10 : i32, message = "nqd,nkd->nqk"}> : () -> ()
    %cst_25 = arith.constant dense<0.000000e+00> : vector<8x8x8xf32>
    %123 = tpu.matmul %61, %79, %cst_25 {dimension_numbers = #tpu.dot_dimension_numbers<[2], [2], [1], [1], [0, 0, 0, 1, 1, 1], [0], [0]>} : vector<8x8x8xbf16>, vector<8x8x8xbf16>, vector<8x8x8xf32> -> vector<8x8x8xf32>
    "tpu.trace_stop"() : () -> ()
    %124 = vector.broadcast %122 : vector<8x1x8xf32> to vector<8x8x8xf32>
    %125 = arith.addf %123, %124 : vector<8x8x8xf32>
    %cst_26 = arith.constant dense<0xFF800000> : vector<8x8xf32>
    %126 = vector.multi_reduction <maximumf>, %125, %cst_26 [2] : vector<8x8x8xf32> to vector<8x8xf32>
    %127 = vector.shape_cast %126 : vector<8x8xf32> to vector<8x8x1xf32>
    %128 = vector.broadcast %127 : vector<8x8x1xf32> to vector<8x8x8xf32>
    %129 = arith.subf %125, %128 : vector<8x8x8xf32>
    %130 = math.exp %129 : vector<8x8x8xf32>
    %cst_27 = arith.constant dense<0.000000e+00> : vector<8x8xf32>
    %131 = vector.multi_reduction <add>, %130, %cst_27 [2] : vector<8x8x8xf32> to vector<8x8xf32>
    %132 = vector.shape_cast %131 : vector<8x8xf32> to vector<8x8x1xf32>
    %133 = tpu.reciprocal %132 {approx = true} : vector<8x8x1xf32> -> vector<8x8x1xf32>
    %134 = vector.broadcast %133 : vector<8x8x1xf32> to vector<8x8x8xf32>
    %135 = arith.mulf %130, %134 : vector<8x8x8xf32>
    %136 = arith.truncf %135 : vector<8x8x8xf32> to vector<8x8x8xbf16>
    "tpu.trace_start"() <{level = 10 : i32, message = "nqk,nkd->nqd"}> : () -> ()
    %cst_28 = arith.constant dense<0.000000e+00> : vector<8x8x8xf32>
    %137 = tpu.matmul %136, %97, %cst_28 {dimension_numbers = #tpu.dot_dimension_numbers<[2], [1], [1], [2], [0, 0, 0, 1, 1, 2], [0], [0]>} : vector<8x8x8xbf16>, vector<8x8x8xbf16>, vector<8x8x8xf32> -> vector<8x8x8xf32>
    "tpu.trace_stop"() : () -> ()
    %138 = vector.extract_strided_slice %137 {offsets = [0, 0, 0], sizes = [1, 8, 8], strides = [1, 1, 1]} : vector<8x8x8xf32> to vector<1x8x8xf32>
    %139 = vector.shape_cast %138 : vector<1x8x8xf32> to vector<8x8xf32>
    %140 = vector.extract_strided_slice %137 {offsets = [1, 0, 0], sizes = [1, 8, 8], strides = [1, 1, 1]} : vector<8x8x8xf32> to vector<1x8x8xf32>
    %141 = vector.shape_cast %140 : vector<1x8x8xf32> to vector<8x8xf32>
    %142 = vector.extract_strided_slice %137 {offsets = [2, 0, 0], sizes = [1, 8, 8], strides = [1, 1, 1]} : vector<8x8x8xf32> to vector<1x8x8xf32>
    %143 = vector.shape_cast %142 : vector<1x8x8xf32> to vector<8x8xf32>
    %144 = vector.extract_strided_slice %137 {offsets = [3, 0, 0], sizes = [1, 8, 8], strides = [1, 1, 1]} : vector<8x8x8xf32> to vector<1x8x8xf32>
    %145 = vector.shape_cast %144 : vector<1x8x8xf32> to vector<8x8xf32>
    %146 = tpu.concatenate %139, %141, %143, %145 in 1 : vector<8x8xf32>, vector<8x8xf32>, vector<8x8xf32>, vector<8x8xf32> -> vector<8x32xf32>
    %147 = vector.extract_strided_slice %137 {offsets = [4, 0, 0], sizes = [1, 8, 8], strides = [1, 1, 1]} : vector<8x8x8xf32> to vector<1x8x8xf32>
    %148 = vector.shape_cast %147 : vector<1x8x8xf32> to vector<8x8xf32>
    %149 = vector.extract_strided_slice %137 {offsets = [5, 0, 0], sizes = [1, 8, 8], strides = [1, 1, 1]} : vector<8x8x8xf32> to vector<1x8x8xf32>
    %150 = vector.shape_cast %149 : vector<1x8x8xf32> to vector<8x8xf32>
    %151 = vector.extract_strided_slice %137 {offsets = [6, 0, 0], sizes = [1, 8, 8], strides = [1, 1, 1]} : vector<8x8x8xf32> to vector<1x8x8xf32>
    %152 = vector.shape_cast %151 : vector<1x8x8xf32> to vector<8x8xf32>
    %153 = vector.extract_strided_slice %137 {offsets = [7, 0, 0], sizes = [1, 8, 8], strides = [1, 1, 1]} : vector<8x8x8xf32> to vector<1x8x8xf32>
    %154 = vector.shape_cast %153 : vector<1x8x8xf32> to vector<8x8xf32>
    %155 = tpu.concatenate %148, %150, %152, %154 in 1 : vector<8x8xf32>, vector<8x8xf32>, vector<8x8xf32>, vector<8x8xf32> -> vector<8x32xf32>
    %156 = tpu.concatenate %146, %155 in 0 : vector<8x32xf32>, vector<8x32xf32> -> vector<16x32xf32>
    %157 = arith.truncf %156 : vector<16x32xf32> to vector<16x32xbf16>
    %c0_29 = arith.constant 0 : index
    %c0_30 = arith.constant 0 : index
    %c0_31 = arith.constant 0 : index
    %158 = vector.load %arg6[%c0_29, %c0_30, %c0_31] : memref<1x32x32xbf16, #tpu.memory_space<vmem>>, vector<1x32x32xbf16>
    %159 = vector.shape_cast %158 : vector<1x32x32xbf16> to vector<32x32xbf16>
    %cst_32 = arith.constant dense<0.000000e+00> : vector<16x32xf32>
    %160 = tpu.matmul %157, %159, %cst_32 {dimension_numbers = #tpu.dot_dimension_numbers<[1], [0], [0], [1], [0, 0, 1, 1], [], []>} : vector<16x32xbf16>, vector<32x32xbf16>, vector<16x32xf32> -> vector<16x32xf32>
    %c0_33 = arith.constant 0 : index
    %c0_34 = arith.constant 0 : index
    %c0_35 = arith.constant 0 : index
    %161 = vector.load %arg7[%c0_33, %c0_34, %c0_35] : memref<1x1x32xf32, #tpu.memory_space<vmem>>, vector<1x1x32xf32>
    %162 = vector.shape_cast %161 : vector<1x1x32xf32> to vector<1x32xf32>
    %163 = vector.broadcast %162 : vector<1x32xf32> to vector<16x32xf32>
    %164 = arith.addf %160, %163 : vector<16x32xf32>
    %165 = arith.addf %3, %164 : vector<16x32xf32>
    %c0_36 = arith.constant 0 : index
    %c0_37 = arith.constant 0 : index
    %c0_38 = arith.constant 0 : index
    %166 = vector.load %arg10[%c0_36, %c0_37, %c0_38] : memref<1x1x32xf32, #tpu.memory_space<vmem>>, vector<1x1x32xf32>
    %167 = vector.shape_cast %166 : vector<1x1x32xf32> to vector<1x32xf32>
    %c0_39 = arith.constant 0 : index
    %c0_40 = arith.constant 0 : index
    %c0_41 = arith.constant 0 : index
    %168 = vector.load %arg11[%c0_39, %c0_40, %c0_41] : memref<1x1x32xf32, #tpu.memory_space<vmem>>, vector<1x1x32xf32>
    %169 = vector.shape_cast %168 : vector<1x1x32xf32> to vector<1x32xf32>
    %cst_42 = arith.constant dense<0.000000e+00> : vector<16xf32>
    %170 = vector.multi_reduction <add>, %165, %cst_42 [1] : vector<16x32xf32> to vector<16xf32>
    %171 = vector.shape_cast %170 : vector<16xf32> to vector<16x1xf32>
    %cst_43 = arith.constant 3.200000e+01 : f32
    %172 = vector.broadcast %cst_43 : f32 to vector<16x1xf32>
    %173 = arith.divf %171, %172 : vector<16x1xf32>
    %174 = vector.broadcast %173 : vector<16x1xf32> to vector<16x32xf32>
    %175 = arith.subf %165, %174 : vector<16x32xf32>
    %176 = arith.mulf %175, %175 : vector<16x32xf32>
    %cst_44 = arith.constant dense<0.000000e+00> : vector<16xf32>
    %177 = vector.multi_reduction <add>, %176, %cst_44 [1] : vector<16x32xf32> to vector<16xf32>
    %178 = vector.shape_cast %177 : vector<16xf32> to vector<16x1xf32>
    %cst_45 = arith.constant 0.0322580636 : f32
    %179 = vector.broadcast %cst_45 : f32 to vector<16x1xf32>
    %180 = arith.mulf %178, %179 : vector<16x1xf32>
    %181 = vector.broadcast %173 : vector<16x1xf32> to vector<16x32xf32>
    %182 = arith.subf %165, %181 : vector<16x32xf32>
    %183 = vector.broadcast %167 : vector<1x32xf32> to vector<16x32xf32>
    %184 = arith.mulf %183, %182 : vector<16x32xf32>
    %185 = math.sqrt %180 : vector<16x1xf32>
    %cst_46 = arith.constant 9.99999997E-7 : f32
    %186 = vector.broadcast %cst_46 : f32 to vector<16x1xf32>
    %187 = arith.addf %185, %186 : vector<16x1xf32>
    %188 = vector.broadcast %187 : vector<16x1xf32> to vector<16x32xf32>
    %189 = arith.divf %184, %188 : vector<16x32xf32>
    %190 = vector.broadcast %169 : vector<1x32xf32> to vector<16x32xf32>
    %191 = arith.addf %189, %190 : vector<16x32xf32>
    %192 = arith.truncf %191 : vector<16x32xf32> to vector<16x32xbf16>
    %c0_47 = arith.constant 0 : index
    %c0_48 = arith.constant 0 : index
    %c0_49 = arith.constant 0 : index
    %193 = vector.load %arg12[%c0_47, %c0_48, %c0_49] : memref<1x32x64xbf16, #tpu.memory_space<vmem>>, vector<1x32x64xbf16>
    %194 = vector.shape_cast %193 : vector<1x32x64xbf16> to vector<32x64xbf16>
    %cst_50 = arith.constant dense<0.000000e+00> : vector<16x64xf32>
    %195 = tpu.matmul %192, %194, %cst_50 {dimension_numbers = #tpu.dot_dimension_numbers<[1], [0], [0], [1], [0, 0, 1, 1], [], []>} : vector<16x32xbf16>, vector<32x64xbf16>, vector<16x64xf32> -> vector<16x64xf32>
    %c0_51 = arith.constant 0 : index
    %c0_52 = arith.constant 0 : index
    %c0_53 = arith.constant 0 : index
    %196 = vector.load %arg13[%c0_51, %c0_52, %c0_53] : memref<1x1x64xf32, #tpu.memory_space<vmem>>, vector<1x1x64xf32>
    %197 = vector.shape_cast %196 : vector<1x1x64xf32> to vector<1x64xf32>
    %198 = vector.broadcast %197 : vector<1x64xf32> to vector<16x64xf32>
    %199 = arith.addf %195, %198 : vector<16x64xf32>
    %cst_54 = arith.constant 0.000000e+00 : f32
    %200 = vector.broadcast %cst_54 : f32 to vector<16x64xf32>
    %201 = arith.maximumf %199, %200 : vector<16x64xf32>
    %202 = arith.truncf %201 : vector<16x64xf32> to vector<16x64xbf16>
    %c0_55 = arith.constant 0 : index
    %c0_56 = arith.constant 0 : index
    %c0_57 = arith.constant 0 : index
    %203 = vector.load %arg14[%c0_55, %c0_56, %c0_57] : memref<1x64x32xbf16, #tpu.memory_space<vmem>>, vector<1x64x32xbf16>
    %204 = vector.shape_cast %203 : vector<1x64x32xbf16> to vector<64x32xbf16>
    %cst_58 = arith.constant dense<0.000000e+00> : vector<16x32xf32>
    %205 = tpu.matmul %202, %204, %cst_58 {dimension_numbers = #tpu.dot_dimension_numbers<[1], [0], [0], [1], [0, 0, 1, 1], [], []>} : vector<16x64xbf16>, vector<64x32xbf16>, vector<16x32xf32> -> vector<16x32xf32>
    %c0_59 = arith.constant 0 : index
    %c0_60 = arith.constant 0 : index
    %c0_61 = arith.constant 0 : index
    %206 = vector.load %arg15[%c0_59, %c0_60, %c0_61] : memref<1x1x32xf32, #tpu.memory_space<vmem>>, vector<1x1x32xf32>
    %207 = vector.shape_cast %206 : vector<1x1x32xf32> to vector<1x32xf32>
    %208 = vector.broadcast %207 : vector<1x32xf32> to vector<16x32xf32>
    %209 = arith.addf %205, %208 : vector<16x32xf32>
    %210 = arith.addf %165, %209 : vector<16x32xf32>
    %c0_62 = arith.constant 0 : index
    %c0_63 = arith.constant 0 : index
    %211 = vector.load %arg19[%c0_62, %c0_63] : memref<16x32xf32, #tpu.memory_space<vmem>>, vector<16x32xf32>
    tpu.vector_store %arg19[%c0_62, %c0_63], %210 {strides = array<i32>} : memref<16x32xf32, #tpu.memory_space<vmem>>, vector<16x32xf32>,
    %c1_i32 = arith.constant 1 : i32
    %212 = arith.cmpi eq, %arg1, %c1_i32 : i32
    %213 = arith.extui %212 : i1 to i32
    %c0_i32_64 = arith.constant 0 : i32
    %214 = arith.cmpi ne, %213, %c0_i32_64 : i32
    scf.if %214 {
      %c0_65 = arith.constant 0 : index
      %c0_66 = arith.constant 0 : index
      %215 = vector.load %arg16[%c0_65, %c0_66] : memref<1x32xf32, #tpu.memory_space<vmem>>, vector<1x32xf32>
      %c0_67 = arith.constant 0 : index
      %c0_68 = arith.constant 0 : index
      %216 = vector.load %arg17[%c0_67, %c0_68] : memref<1x32xf32, #tpu.memory_space<vmem>>, vector<1x32xf32>
      %cst_69 = arith.constant dense<0.000000e+00> : vector<16xf32>
      %217 = vector.multi_reduction <add>, %210, %cst_69 [1] : vector<16x32xf32> to vector<16xf32>
      %218 = vector.shape_cast %217 : vector<16xf32> to vector<16x1xf32>
      %cst_70 = arith.constant 3.200000e+01 : f32
      %219 = vector.broadcast %cst_70 : f32 to vector<16x1xf32>
      %220 = arith.divf %218, %219 : vector<16x1xf32>
      %221 = vector.broadcast %220 : vector<16x1xf32> to vector<16x32xf32>
      %222 = arith.subf %210, %221 : vector<16x32xf32>
      %223 = arith.mulf %222, %222 : vector<16x32xf32>
      %cst_71 = arith.constant dense<0.000000e+00> : vector<16xf32>
      %224 = vector.multi_reduction <add>, %223, %cst_71 [1] : vector<16x32xf32> to vector<16xf32>
      %225 = vector.shape_cast %224 : vector<16xf32> to vector<16x1xf32>
      %cst_72 = arith.constant 0.0322580636 : f32
      %226 = vector.broadcast %cst_72 : f32 to vector<16x1xf32>
      %227 = arith.mulf %225, %226 : vector<16x1xf32>
      %228 = vector.broadcast %220 : vector<16x1xf32> to vector<16x32xf32>
      %229 = arith.subf %210, %228 : vector<16x32xf32>
      %230 = vector.broadcast %215 : vector<1x32xf32> to vector<16x32xf32>
      %231 = arith.mulf %230, %229 : vector<16x32xf32>
      %232 = math.sqrt %227 : vector<16x1xf32>
      %cst_73 = arith.constant 9.99999997E-7 : f32
      %233 = vector.broadcast %cst_73 : f32 to vector<16x1xf32>
      %234 = arith.addf %232, %233 : vector<16x1xf32>
      %235 = vector.broadcast %234 : vector<16x1xf32> to vector<16x32xf32>
      %236 = arith.divf %231, %235 : vector<16x32xf32>
      %237 = vector.broadcast %216 : vector<1x32xf32> to vector<16x32xf32>
      %238 = arith.addf %236, %237 : vector<16x32xf32>
      %239 = vector.shape_cast %238 : vector<16x32xf32> to vector<2x8x32xf32>
      %c0_74 = arith.constant 0 : index
      %c0_75 = arith.constant 0 : index
      %c0_76 = arith.constant 0 : index
      %240 = vector.load %arg18[%c0_74, %c0_75, %c0_76] : memref<2x8x32xf32, #tpu.memory_space<vmem>>, vector<2x8x32xf32>
      tpu.vector_store %arg18[%c0_74, %c0_75, %c0_76], %239 {strides = array<i32>} : memref<2x8x32xf32, #tpu.memory_space<vmem>>, vector<2x8x32xf32>,
    } else {
    }
    return
  }
  func.func @transform_0(%arg0: i32, %arg1: i32) -> (i32, i32, i32) {
    %c0_i32 = arith.constant 0 : i32
    %c0_i32_0 = arith.constant 0 : i32
    %c0_i32_1 = arith.constant 0 : i32
    return %arg0, %c0_i32, %c0_i32_0 : i32, i32, i32
  }
  func.func @transform_1(%arg0: i32, %arg1: i32) -> (i32, i32, i32) {
    %c0_i32 = arith.constant 0 : i32
    %c0_i32_0 = arith.constant 0 : i32
    %c0_i32_1 = arith.constant 0 : i32
    return %arg0, %c0_i32, %c0_i32_0 : i32, i32, i32
  }
  func.func @transform_2(%arg0: i32, %arg1: i32) -> (i32, i32, i32) {
    %c0_i32 = arith.constant 0 : i32
    %c0_i32_0 = arith.constant 0 : i32
    %c0_i32_1 = arith.constant 0 : i32
    return %arg1, %c0_i32, %c0_i32_0 : i32, i32, i32
  }
  func.func @transform_3(%arg0: i32, %arg1: i32) -> (i32, i32, i32) {
    %c0_i32 = arith.constant 0 : i32
    %c0_i32_0 = arith.constant 0 : i32
    %c0_i32_1 = arith.constant 0 : i32
    return %arg1, %c0_i32, %c0_i32_0 : i32, i32, i32
  }
  func.func @transform_4(%arg0: i32, %arg1: i32) -> (i32, i32, i32) {
    %c0_i32 = arith.constant 0 : i32
    %c0_i32_0 = arith.constant 0 : i32
    %c0_i32_1 = arith.constant 0 : i32
    return %arg1, %c0_i32, %c0_i32_0 : i32, i32, i32
  }
  func.func @transform_5(%arg0: i32, %arg1: i32) -> (i32, i32, i32) {
    %c0_i32 = arith.constant 0 : i32
    %c0_i32_0 = arith.constant 0 : i32
    %c0_i32_1 = arith.constant 0 : i32
    return %arg1, %c0_i32, %c0_i32_0 : i32, i32, i32
  }
  func.func @transform_6(%arg0: i32, %arg1: i32) -> (i32, i32, i32) {
    %c0_i32 = arith.constant 0 : i32
    %c0_i32_0 = arith.constant 0 : i32
    %c0_i32_1 = arith.constant 0 : i32
    return %arg1, %c0_i32, %c0_i32_0 : i32, i32, i32
  }
  func.func @transform_7(%arg0: i32, %arg1: i32) -> (i32, i32, i32) {
    %c0_i32 = arith.constant 0 : i32
    %c0_i32_0 = arith.constant 0 : i32
    %c0_i32_1 = arith.constant 0 : i32
    return %arg1, %c0_i32, %c0_i32_0 : i32, i32, i32
  }
  func.func @transform_8(%arg0: i32, %arg1: i32) -> (i32, i32, i32) {
    %c0_i32 = arith.constant 0 : i32
    %c0_i32_0 = arith.constant 0 : i32
    %c0_i32_1 = arith.constant 0 : i32
    return %arg1, %c0_i32, %c0_i32_0 : i32, i32, i32
  }
  func.func @transform_9(%arg0: i32, %arg1: i32) -> (i32, i32, i32) {
    %c0_i32 = arith.constant 0 : i32
    %c0_i32_0 = arith.constant 0 : i32
    %c0_i32_1 = arith.constant 0 : i32
    return %arg1, %c0_i32, %c0_i32_0 : i32, i32, i32
  }
  func.func @transform_10(%arg0: i32, %arg1: i32) -> (i32, i32, i32) {
    %c0_i32 = arith.constant 0 : i32
    %c0_i32_0 = arith.constant 0 : i32
    %c0_i32_1 = arith.constant 0 : i32
    return %arg1, %c0_i32, %c0_i32_0 : i32, i32, i32
  }
  func.func @transform_11(%arg0: i32, %arg1: i32) -> (i32, i32, i32) {
    %c0_i32 = arith.constant 0 : i32
    %c0_i32_0 = arith.constant 0 : i32
    %c0_i32_1 = arith.constant 0 : i32
    return %arg1, %c0_i32, %c0_i32_0 : i32, i32, i32
  }
  func.func @transform_12(%arg0: i32, %arg1: i32) -> (i32, i32, i32) {
    %c0_i32 = arith.constant 0 : i32
    %c0_i32_0 = arith.constant 0 : i32
    %c0_i32_1 = arith.constant 0 : i32
    return %arg1, %c0_i32, %c0_i32_0 : i32, i32, i32
  }
  func.func @transform_13(%arg0: i32, %arg1: i32) -> (i32, i32, i32) {
    %c0_i32 = arith.constant 0 : i32
    %c0_i32_0 = arith.constant 0 : i32
    %c0_i32_1 = arith.constant 0 : i32
    return %arg1, %c0_i32, %c0_i32_0 : i32, i32, i32
  }
  func.func @transform_14(%arg0: i32, %arg1: i32) -> (i32, i32) {
    %c0_i32 = arith.constant 0 : i32
    %c0_i32_0 = arith.constant 0 : i32
    %c0_i32_1 = arith.constant 0 : i32
    return %c0_i32, %c0_i32_0 : i32, i32
  }
  func.func @transform_15(%arg0: i32, %arg1: i32) -> (i32, i32) {
    %c0_i32 = arith.constant 0 : i32
    %c0_i32_0 = arith.constant 0 : i32
    %c0_i32_1 = arith.constant 0 : i32
    return %c0_i32, %c0_i32_0 : i32, i32
  }
  func.func @transform_16(%arg0: i32, %arg1: i32) -> (i32, i32, i32) {
    %c0_i32 = arith.constant 0 : i32
    %c0_i32_0 = arith.constant 0 : i32
    %c0_i32_1 = arith.constant 0 : i32
    return %arg0, %c0_i32, %c0_i32_0 : i32, i32, i32
  }
}

</mosaic_0001>

<llo_original>
// kernel: tpu_custom_call.1
$region0: #{tpu_custom_call.1}
  #allocation0 [shape = 'u32[]', space=smem, size = 0x4, offset = 0x4, fixed_abs, tag = 'smem constant byte address 0x4 - core index']
  #allocation1 [shape = 'u32[72,128]{1,0:T(1,128)}', space=vmem, size = 0x9000, scoped, tag = 'internal scratch']
  #allocation2 [shape = 'f32[16,32]{1,0:T(8,128)}', space=vmem, size = 0x2000, scoped, tag = 'scratch operand']
  %s0 = inlined_call_operand.hbm [shape: f32[2,8,32], index: 0, kind: input, shape index: {}]
  %s1 = inlined_call_operand.hbm [shape: f32[2,1,8], index: 1, kind: input, shape index: {}]
  %s2 = inlined_call_operand.vmem [shape: bf16[2,32,96], index: 2, kind: input, shape index: {}]
  %s3 = inlined_call_operand.hbm [shape: f32[2,1,96], index: 3, kind: input, shape index: {}]
  %s4 = inlined_call_operand.vmem [shape: bf16[2,32,32], index: 4, kind: input, shape index: {}]
  %s5 = inlined_call_operand.vmem [shape: f32[2,1,32], index: 5, kind: input, shape index: {}]
  %s6 = inlined_call_operand.vmem [shape: f32[2,1,32], index: 6, kind: input, shape index: {}]
  %s7 = inlined_call_operand.hbm [shape: f32[2,1,32], index: 7, kind: input, shape index: {}]
  %s8 = inlined_call_operand.vmem [shape: f32[2,1,32], index: 8, kind: input, shape index: {}]
  %s9 = inlined_call_operand.hbm [shape: f32[2,1,32], index: 9, kind: input, shape index: {}]
  %s10 = inlined_call_operand.vmem [shape: bf16[2,32,64], index: 10, kind: input, shape index: {}]
  %s11 = inlined_call_operand.vmem [shape: f32[2,1,64], index: 11, kind: input, shape index: {}]
  %s12 = inlined_call_operand.vmem [shape: bf16[2,64,32], index: 12, kind: input, shape index: {}]
  %s13 = inlined_call_operand.vmem [shape: f32[2,1,32], index: 13, kind: input, shape index: {}]
  %s14 = inlined_call_operand.vmem [shape: f32[1,32], index: 14, kind: input, shape index: {}]
  %s15 = inlined_call_operand.vmem [shape: f32[1,32], index: 15, kind: input, shape index: {}]
  %s16 = inlined_call_operand.hbm [shape: f32[2,8,32], index: 16, kind: output, shape index: {}]
  %s17 = sld [smem:[#allocation0]]
  $region125: #{tpu_custom_call.1} parent=0
    _
  %s19 = ssub.s32 1, %s17
  %s20 = scalar_select 0, %s19, %s17
  $region1: #{tpu_custom_call.1} parent=0
    #allocation3 [shape = 'u8[8192]{0}', space=vmem, size = 0x2000, scoped, tag = 'input window, operand 0, single buffered']
    #allocation4 [shape = 's32[2]{0}', space=sflag, size = 0x8, scoped, tag = 'scoped memory for tpu_custom_call.1']
    #allocation5 [shape = 's32[2]{0}', space=sflag, size = 0x8, scoped, tag = 'scoped memory for tpu_custom_call.1']
    #allocation6 [shape = 'u8[1024]{0}', space=vmem, size = 0x400, scoped, tag = 'input window, operand 1, single buffered']
    #allocation7 [shape = 's32[1]{0}', space=sflag, size = 0x4, scoped, tag = 'scoped memory for tpu_custom_call.1']
    #allocation8 [shape = 'u8[1024]{0}', space=vmem, size = 0x400, scoped, tag = 'input window, operand 3']
    #allocation9 [shape = 'u8[1024]{0}', space=vmem, size = 0x400, scoped, tag = 'input window, operand 7']
    #allocation10 [shape = 'u8[1024]{0}', space=vmem, size = 0x400, scoped, tag = 'input window, operand 9']
    #allocation11 [shape = 'u8[8192]{0}', space=vmem, size = 0x2000, scoped, tag = 'output window, operand 0, single buffered']
    %21 = vsyncpa [#allocation4], 0
    %22 = vsyncpa [#allocation7], 0
    %23 = vsyncpa [#allocation5], 0
    loop: start=0, step=1, limit=4
    $region2: #{tpu_custom_call.1} parent=1 // loop_pre_header
      _
    $region3: #{tpu_custom_call.1} parent=1 // loop_header
      %s25 = sphi 0, %s29
      %p26 = scmp.ge.s32.totalorder %s25, 4
      %s32 = sphi 0, %s44
      %s33 = sphi 0, %s40
      %s34 = sphi 0, %s32
      %s35 = sphi 0, %s33
      %s36 = sphi 0, %s34
      %s37 = sphi 0, %s35
      %s47 = sphi 0, %s49
      %s50 = sphi 0, %s47
      %s51 = sphi 0, %s50
      %s67 = sphi 0, %s51
      %s73 = sphi 0, %s75
      %s76 = sphi 0, %s73
      %s77 = sphi 0, %s76
      %s93 = sphi 0, %s77
      %s99 = sphi 0, %s101
      %s102 = sphi 0, %s99
      %s103 = sphi 0, %s102
      %s119 = sphi 0, %s103
      %s125 = sphi 0, %s127
      %s128 = sphi 0, %s125
      %s129 = sphi 0, %s128
      %s145 = sphi 0, %s129
      %s151 = sphi 0, %s153
      %s154 = sphi 0, %s151
      %s155 = sphi 0, %s154
      %s171 = sphi 0, %s155
      %s177 = sphi 0, %s179
      %s180 = sphi 0, %s177
      %s181 = sphi 0, %s180
      %s197 = sphi 0, %s181
      %s203 = sphi 0, %s205
      %s206 = sphi 0, %s203
      %s207 = sphi 0, %s206
      %s223 = sphi 0, %s207
      %s229 = sphi 0, %s231
      %s232 = sphi 0, %s229
      %s233 = sphi 0, %s232
      %s249 = sphi 0, %s233
      %s255 = sphi 0, %s257
      %s258 = sphi 0, %s255
      %s259 = sphi 0, %s258
      %s275 = sphi 0, %s259
      %s281 = sphi 0, %s283
      %s284 = sphi 0, %s281
      %s285 = sphi 0, %s284
      %s301 = sphi 0, %s285
      %s307 = sphi 0, %s309
      %s310 = sphi 0, %s307
      %s311 = sphi 0, %s310
      %s327 = sphi 0, %s311
      %s333 = sphi 0, %s335
      %s336 = sphi 0, %s333
      %s337 = sphi 0, %s336
      %s353 = sphi 0, %s337
      %s359 = sphi 0, %s361
      %s362 = sphi 0, %s359
      %s363 = sphi 0, %s362
      %s379 = sphi 0, %s363
      %s385 = sphi 0, %s387
      %s388 = sphi 0, %s385
      %s389 = sphi 0, %s388
      %s405 = sphi 0, %s389
      %s409 = sphi 0, %s409
      %s411 = sphi 0, %s409
      %s412 = sphi 0, %s411
      %s426 = sphi 0, %s412
      %s430 = sphi 0, %s430
      %s432 = sphi 0, %s430
      %s433 = sphi 0, %s432
      %s447 = sphi 0, %s433
      %s453 = sphi 0, %s455
      %s456 = sphi 0, %s453
      %s457 = sphi 0, %s456
      %s473 = sphi 0, %s457
    $region4: #{tpu_custom_call.1} parent=1 // loop_header_branch
      %28 = sbr.rel (%p26) target = $region8
    $region5: #{tpu_custom_call.1} parent=1 // loop_body
      %s30 = ssub.s32 %s25, 1
      %s31 = ssub.s32 %s25, 2
      %s38 = sadd.s32 1, %s33
      %p39 = scmp.ge.s32.totalorder %s38, 2
      %s40 = scalar_select %p39, 0, %s38
      %s41 = sadd.s32 1, %s32
      %s42 = scalar_select %p39, %s41, %s32
      %p43 = scmp.ge.s32.totalorder %s42, 1
      %s44 = scalar_select %p43, 0, %s42
      %s45 = ssub.s32 %s32, %s44
      %p46 = scmp.eq.s32.totalorder %s45, 0
      %s48 = sadd.s32 %s47, 1
      %s49 = scalar_select %p46, %s47, %s48
      %p52 = pneg %p46
      %p53 = scmp.eq.s32.totalorder %s25, 1
      %p54 = por %p52, %p53
      %p55 = scmp.ne.s32.totalorder %s47, %s50
      %p56 = scmp.eq.s32.totalorder %s25, 0
      %p57 = por %p55, %p56
      %p58 = scmp.ne.s32.totalorder %s47, %s50
      %p59 = scmp.eq.s32.totalorder %s30, 1
      %p60 = por %p58, %p59
      %p61 = scmp.ne.s32.totalorder %s50, %s51
      %p62 = scmp.eq.s32.totalorder %s30, 0
      %p63 = por %p61, %p62
      %p64 = scmp.ne.s32.totalorder %s50, %s51
      %p65 = scmp.eq.s32.totalorder %s31, 1
      %p66 = por %p64, %p65
      %p68 = scmp.ne.s32.totalorder %s51, %s67
      %p69 = scmp.eq.s32.totalorder %s31, 0
      %p70 = por %p68, %p69
      %s71 = ssub.s32 %s32, %s44
      %p72 = scmp.eq.s32.totalorder %s71, 0
      %s74 = sadd.s32 %s73, 1
      %s75 = scalar_select %p72, %s73, %s74
      %p78 = pneg %p72
      %p79 = scmp.eq.s32.totalorder %s25, 1
      %p80 = por %p78, %p79
      %p81 = scmp.ne.s32.totalorder %s73, %s76
      %p82 = scmp.eq.s32.totalorder %s25, 0
      %p83 = por %p81, %p82
      %p84 = scmp.ne.s32.totalorder %s73, %s76
      %p85 = scmp.eq.s32.totalorder %s30, 1
      %p86 = por %p84, %p85
      %p87 = scmp.ne.s32.totalorder %s76, %s77
      %p88 = scmp.eq.s32.totalorder %s30, 0
      %p89 = por %p87, %p88
      %p90 = scmp.ne.s32.totalorder %s76, %s77
      %p91 = scmp.eq.s32.totalorder %s31, 1
      %p92 = por %p90, %p91
      %p94 = scmp.ne.s32.totalorder %s77, %s93
      %p95 = scmp.eq.s32.totalorder %s31, 0
      %p96 = por %p94, %p95
      %s97 = ssub.s32 %s33, %s40
      %p98 = scmp.eq.s32.totalorder %s97, 0
      %s100 = sadd.s32 %s99, 1
      %s101 = scalar_select %p98, %s99, %s100
      %p104 = pneg %p98
      %p105 = scmp.eq.s32.totalorder %s25, 1
      %p106 = por %p104, %p105
      %p107 = scmp.ne.s32.totalorder %s99, %s102
      %p108 = scmp.eq.s32.totalorder %s25, 0
      %p109 = por %p107, %p108
      %p110 = scmp.ne.s32.totalorder %s99, %s102
      %p111 = scmp.eq.s32.totalorder %s30, 1
      %p112 = por %p110, %p111
      %p113 = scmp.ne.s32.totalorder %s102, %s103
      %p114 = scmp.eq.s32.totalorder %s30, 0
      %p115 = por %p113, %p114
      %p116 = scmp.ne.s32.totalorder %s102, %s103
      %p117 = scmp.eq.s32.totalorder %s31, 1
      %p118 = por %p116, %p117
      %p120 = scmp.ne.s32.totalorder %s103, %s119
      %p121 = scmp.eq.s32.totalorder %s31, 0
      %p122 = por %p120, %p121
      %s123 = ssub.s32 %s33, %s40
      %p124 = scmp.eq.s32.totalorder %s123, 0
      %s126 = sadd.s32 %s125, 1
      %s127 = scalar_select %p124, %s125, %s126
      %p130 = pneg %p124
      %p131 = scmp.eq.s32.totalorder %s25, 1
      %p132 = por %p130, %p131
      %p133 = scmp.ne.s32.totalorder %s125, %s128
      %p134 = scmp.eq.s32.totalorder %s25, 0
      %p135 = por %p133, %p134
      %p136 = scmp.ne.s32.totalorder %s125, %s128
      %p137 = scmp.eq.s32.totalorder %s30, 1
      %p138 = por %p136, %p137
      %p139 = scmp.ne.s32.totalorder %s128, %s129
      %p140 = scmp.eq.s32.totalorder %s30, 0
      %p141 = por %p139, %p140
      %p142 = scmp.ne.s32.totalorder %s128, %s129
      %p143 = scmp.eq.s32.totalorder %s31, 1
      %p144 = por %p142, %p143
      %p146 = scmp.ne.s32.totalorder %s129, %s145
      %p147 = scmp.eq.s32.totalorder %s31, 0
      %p148 = por %p146, %p147
      %s149 = ssub.s32 %s33, %s40
      %p150 = scmp.eq.s32.totalorder %s149, 0
      %s152 = sadd.s32 %s151, 1
      %s153 = scalar_select %p150, %s151, %s152
      %p156 = pneg %p150
      %p157 = scmp.eq.s32.totalorder %s25, 1
      %p158 = por %p156, %p157
      %p159 = scmp.ne.s32.totalorder %s151, %s154
      %p160 = scmp.eq.s32.totalorder %s25, 0
      %p161 = por %p159, %p160
      %p162 = scmp.ne.s32.totalorder %s151, %s154
      %p163 = scmp.eq.s32.totalorder %s30, 1
      %p164 = por %p162, %p163
      %p165 = scmp.ne.s32.totalorder %s154, %s155
      %p166 = scmp.eq.s32.totalorder %s30, 0
      %p167 = por %p165, %p166
      %p168 = scmp.ne.s32.totalorder %s154, %s155
      %p169 = scmp.eq.s32.totalorder %s31, 1
      %p170 = por %p168, %p169
      %p172 = scmp.ne.s32.totalorder %s155, %s171
      %p173 = scmp.eq.s32.totalorder %s31, 0
      %p174 = por %p172, %p173
      %s175 = ssub.s32 %s33, %s40
      %p176 = scmp.eq.s32.totalorder %s175, 0
      %s178 = sadd.s32 %s177, 1
      %s179 = scalar_select %p176, %s177, %s178
      %p182 = pneg %p176
      %p183 = scmp.eq.s32.totalorder %s25, 1
      %p184 = por %p182, %p183
      %p185 = scmp.ne.s32.totalorder %s177, %s180
      %p186 = scmp.eq.s32.totalorder %s25, 0
      %p187 = por %p185, %p186
      %p188 = scmp.ne.s32.totalorder %s177, %s180
      %p189 = scmp.eq.s32.totalorder %s30, 1
      %p190 = por %p188, %p189
      %p191 = scmp.ne.s32.totalorder %s180, %s181
      %p192 = scmp.eq.s32.totalorder %s30, 0
      %p193 = por %p191, %p192
      %p194 = scmp.ne.s32.totalorder %s180, %s181
      %p195 = scmp.eq.s32.totalorder %s31, 1
      %p196 = por %p194, %p195
      %p198 = scmp.ne.s32.totalorder %s181, %s197
      %p199 = scmp.eq.s32.totalorder %s31, 0
      %p200 = por %p198, %p199
      %s201 = ssub.s32 %s33, %s40
      %p202 = scmp.eq.s32.totalorder %s201, 0
      %s204 = sadd.s32 %s203, 1
      %s205 = scalar_select %p202, %s203, %s204
      %p208 = pneg %p202
      %p209 = scmp.eq.s32.totalorder %s25, 1
      %p210 = por %p208, %p209
      %p211 = scmp.ne.s32.totalorder %s203, %s206
      %p212 = scmp.eq.s32.totalorder %s25, 0
      %p213 = por %p211, %p212
      %p214 = scmp.ne.s32.totalorder %s203, %s206
      %p215 = scmp.eq.s32.totalorder %s30, 1
      %p216 = por %p214, %p215
      %p217 = scmp.ne.s32.totalorder %s206, %s207
      %p218 = scmp.eq.s32.totalorder %s30, 0
      %p219 = por %p217, %p218
      %p220 = scmp.ne.s32.totalorder %s206, %s207
      %p221 = scmp.eq.s32.totalorder %s31, 1
      %p222 = por %p220, %p221
      %p224 = scmp.ne.s32.totalorder %s207, %s223
      %p225 = scmp.eq.s32.totalorder %s31, 0
      %p226 = por %p224, %p225
      %s227 = ssub.s32 %s33, %s40
      %p228 = scmp.eq.s32.totalorder %s227, 0
      %s230 = sadd.s32 %s229, 1
      %s231 = scalar_select %p228, %s229, %s230
      %p234 = pneg %p228
      %p235 = scmp.eq.s32.totalorder %s25, 1
      %p236 = por %p234, %p235
      %p237 = scmp.ne.s32.totalorder %s229, %s232
      %p238 = scmp.eq.s32.totalorder %s25, 0
      %p239 = por %p237, %p238
      %p240 = scmp.ne.s32.totalorder %s229, %s232
      %p241 = scmp.eq.s32.totalorder %s30, 1
      %p242 = por %p240, %p241
      %p243 = scmp.ne.s32.totalorder %s232, %s233
      %p244 = scmp.eq.s32.totalorder %s30, 0
      %p245 = por %p243, %p244
      %p246 = scmp.ne.s32.totalorder %s232, %s233
      %p247 = scmp.eq.s32.totalorder %s31, 1
      %p248 = por %p246, %p247
      %p250 = scmp.ne.s32.totalorder %s233, %s249
      %p251 = scmp.eq.s32.totalorder %s31, 0
      %p252 = por %p250, %p251
      %s253 = ssub.s32 %s33, %s40
      %p254 = scmp.eq.s32.totalorder %s253, 0
      %s256 = sadd.s32 %s255, 1
      %s257 = scalar_select %p254, %s255, %s256
      %p260 = pneg %p254
      %p261 = scmp.eq.s32.totalorder %s25, 1
      %p262 = por %p260, %p261
      %p263 = scmp.ne.s32.totalorder %s255, %s258
      %p264 = scmp.eq.s32.totalorder %s25, 0
      %p265 = por %p263, %p264
      %p266 = scmp.ne.s32.totalorder %s255, %s258
      %p267 = scmp.eq.s32.totalorder %s30, 1
      %p268 = por %p266, %p267
      %p269 = scmp.ne.s32.totalorder %s258, %s259
      %p270 = scmp.eq.s32.totalorder %s30, 0
      %p271 = por %p269, %p270
      %p272 = scmp.ne.s32.totalorder %s258, %s259
      %p273 = scmp.eq.s32.totalorder %s31, 1
      %p274 = por %p272, %p273
      %p276 = scmp.ne.s32.totalorder %s259, %s275
      %p277 = scmp.eq.s32.totalorder %s31, 0
      %p278 = por %p276, %p277
      %s279 = ssub.s32 %s33, %s40
      %p280 = scmp.eq.s32.totalorder %s279, 0
      %s282 = sadd.s32 %s281, 1
      %s283 = scalar_select %p280, %s281, %s282
      %p286 = pneg %p280
      %p287 = scmp.eq.s32.totalorder %s25, 1
      %p288 = por %p286, %p287
      %p289 = scmp.ne.s32.totalorder %s281, %s284
      %p290 = scmp.eq.s32.totalorder %s25, 0
      %p291 = por %p289, %p290
      %p292 = scmp.ne.s32.totalorder %s281, %s284
      %p293 = scmp.eq.s32.totalorder %s30, 1
      %p294 = por %p292, %p293
      %p295 = scmp.ne.s32.totalorder %s284, %s285
      %p296 = scmp.eq.s32.totalorder %s30, 0
      %p297 = por %p295, %p296
      %p298 = scmp.ne.s32.totalorder %s284, %s285
      %p299 = scmp.eq.s32.totalorder %s31, 1
      %p300 = por %p298, %p299
      %p302 = scmp.ne.s32.totalorder %s285, %s301
      %p303 = scmp.eq.s32.totalorder %s31, 0
      %p304 = por %p302, %p303
      %s305 = ssub.s32 %s33, %s40
      %p306 = scmp.eq.s32.totalorder %s305, 0
      %s308 = sadd.s32 %s307, 1
      %s309 = scalar_select %p306, %s307, %s308
      %p312 = pneg %p306
      %p313 = scmp.eq.s32.totalorder %s25, 1
      %p314 = por %p312, %p313
      %p315 = scmp.ne.s32.totalorder %s307, %s310
      %p316 = scmp.eq.s32.totalorder %s25, 0
      %p317 = por %p315, %p316
      %p318 = scmp.ne.s32.totalorder %s307, %s310
      %p319 = scmp.eq.s32.totalorder %s30, 1
      %p320 = por %p318, %p319
      %p321 = scmp.ne.s32.totalorder %s310, %s311
      %p322 = scmp.eq.s32.totalorder %s30, 0
      %p323 = por %p321, %p322
      %p324 = scmp.ne.s32.totalorder %s310, %s311
      %p325 = scmp.eq.s32.totalorder %s31, 1
      %p326 = por %p324, %p325
      %p328 = scmp.ne.s32.totalorder %s311, %s327
      %p329 = scmp.eq.s32.totalorder %s31, 0
      %p330 = por %p328, %p329
      %s331 = ssub.s32 %s33, %s40
      %p332 = scmp.eq.s32.totalorder %s331, 0
      %s334 = sadd.s32 %s333, 1
      %s335 = scalar_select %p332, %s333, %s334
      %p338 = pneg %p332
      %p339 = scmp.eq.s32.totalorder %s25, 1
      %p340 = por %p338, %p339
      %p341 = scmp.ne.s32.totalorder %s333, %s336
      %p342 = scmp.eq.s32.totalorder %s25, 0
      %p343 = por %p341, %p342
      %p344 = scmp.ne.s32.totalorder %s333, %s336
      %p345 = scmp.eq.s32.totalorder %s30, 1
      %p346 = por %p344, %p345
      %p347 = scmp.ne.s32.totalorder %s336, %s337
      %p348 = scmp.eq.s32.totalorder %s30, 0
      %p349 = por %p347, %p348
      %p350 = scmp.ne.s32.totalorder %s336, %s337
      %p351 = scmp.eq.s32.totalorder %s31, 1
      %p352 = por %p350, %p351
      %p354 = scmp.ne.s32.totalorder %s337, %s353
      %p355 = scmp.eq.s32.totalorder %s31, 0
      %p356 = por %p354, %p355
      %s357 = ssub.s32 %s33, %s40
      %p358 = scmp.eq.s32.totalorder %s357, 0
      %s360 = sadd.s32 %s359, 1
      %s361 = scalar_select %p358, %s359, %s360
      %p364 = pneg %p358
      %p365 = scmp.eq.s32.totalorder %s25, 1
      %p366 = por %p364, %p365
      %p367 = scmp.ne.s32.totalorder %s359, %s362
      %p368 = scmp.eq.s32.totalorder %s25, 0
      %p369 = por %p367, %p368
      %p370 = scmp.ne.s32.totalorder %s359, %s362
      %p371 = scmp.eq.s32.totalorder %s30, 1
      %p372 = por %p370, %p371
      %p373 = scmp.ne.s32.totalorder %s362, %s363
      %p374 = scmp.eq.s32.totalorder %s30, 0
      %p375 = por %p373, %p374
      %p376 = scmp.ne.s32.totalorder %s362, %s363
      %p377 = scmp.eq.s32.totalorder %s31, 1
      %p378 = por %p376, %p377
      %p380 = scmp.ne.s32.totalorder %s363, %s379
      %p381 = scmp.eq.s32.totalorder %s31, 0
      %p382 = por %p380, %p381
      %s383 = ssub.s32 %s33, %s40
      %p384 = scmp.eq.s32.totalorder %s383, 0
      %s386 = sadd.s32 %s385, 1
      %s387 = scalar_select %p384, %s385, %s386
      %p390 = pneg %p384
      %p391 = scmp.eq.s32.totalorder %s25, 1
      %p392 = por %p390, %p391
      %p393 = scmp.ne.s32.totalorder %s385, %s388
      %p394 = scmp.eq.s32.totalorder %s25, 0
      %p395 = por %p393, %p394
      %p396 = scmp.ne.s32.totalorder %s385, %s388
      %p397 = scmp.eq.s32.totalorder %s30, 1
      %p398 = por %p396, %p397
      %p399 = scmp.ne.s32.totalorder %s388, %s389
      %p400 = scmp.eq.s32.totalorder %s30, 0
      %p401 = por %p399, %p400
      %p402 = scmp.ne.s32.totalorder %s388, %s389
      %p403 = scmp.eq.s32.totalorder %s31, 1
      %p404 = por %p402, %p403
      %p406 = scmp.ne.s32.totalorder %s389, %s405
      %p407 = scmp.eq.s32.totalorder %s31, 0
      %p408 = por %p406, %p407
      %s410 = sadd.s32 %s409, 1
      %p413 = scmp.eq.s32.totalorder %s25, 1
      %p414 = scmp.ne.s32.totalorder %s409, %s411
      %p415 = scmp.eq.s32.totalorder %s25, 0
      %p416 = por %p414, %p415
      %p417 = scmp.ne.s32.totalorder %s409, %s411
      %p418 = scmp.eq.s32.totalorder %s30, 1
      %p419 = por %p417, %p418
      %p420 = scmp.ne.s32.totalorder %s411, %s412
      %p421 = scmp.eq.s32.totalorder %s30, 0
      %p422 = por %p420, %p421
      %p423 = scmp.ne.s32.totalorder %s411, %s412
      %p424 = scmp.eq.s32.totalorder %s31, 1
      %p425 = por %p423, %p424
      %p427 = scmp.ne.s32.totalorder %s412, %s426
      %p428 = scmp.eq.s32.totalorder %s31, 0
      %p429 = por %p427, %p428
      %s431 = sadd.s32 %s430, 1
      %p434 = scmp.eq.s32.totalorder %s25, 1
      %p435 = scmp.ne.s32.totalorder %s430, %s432
      %p436 = scmp.eq.s32.totalorder %s25, 0
      %p437 = por %p435, %p436
      %p438 = scmp.ne.s32.totalorder %s430, %s432
      %p439 = scmp.eq.s32.totalorder %s30, 1
      %p440 = por %p438, %p439
      %p441 = scmp.ne.s32.totalorder %s432, %s433
      %p442 = scmp.eq.s32.totalorder %s30, 0
      %p443 = por %p441, %p442
      %p444 = scmp.ne.s32.totalorder %s432, %s433
      %p445 = scmp.eq.s32.totalorder %s31, 1
      %p446 = por %p444, %p445
      %p448 = scmp.ne.s32.totalorder %s433, %s447
      %p449 = scmp.eq.s32.totalorder %s31, 0
      %p450 = por %p448, %p449
      %s451 = ssub.s32 %s32, %s44
      %p452 = scmp.eq.s32.totalorder %s451, 0
      %s454 = sadd.s32 %s453, 1
      %s455 = scalar_select %p452, %s453, %s454
      %p458 = pneg %p452
      %p459 = scmp.eq.s32.totalorder %s25, 1
      %p460 = por %p458, %p459
      %p461 = scmp.ne.s32.totalorder %s453, %s456
      %p462 = scmp.eq.s32.totalorder %s25, 0
      %p463 = por %p461, %p462
      %p464 = scmp.ne.s32.totalorder %s453, %s456
      %p465 = scmp.eq.s32.totalorder %s30, 1
      %p466 = por %p464, %p465
      %p467 = scmp.ne.s32.totalorder %s456, %s457
      %p468 = scmp.eq.s32.totalorder %s30, 0
      %p469 = por %p467, %p468
      %p470 = scmp.ne.s32.totalorder %s456, %s457
      %p471 = scmp.eq.s32.totalorder %s31, 1
      %p472 = por %p470, %p471
      %p474 = scmp.ne.s32.totalorder %s457, %s473
      %p475 = scmp.eq.s32.totalorder %s31, 0
      %p476 = por %p474, %p475
      %p477 = scmp.le.s32.totalorder 1, %s25
      %p478 = scmp.lt.s32.totalorder %s25, 3
      %p479 = pnand %p477, %p478
      %p480 = pneg %p479
      // Predicated region
      $region9: #{tpu_custom_call.1} parent=5 // pred_check
        _
      $region10: #{tpu_custom_call.1} parent=5 // pred_check_branch
        %482 = sbr.rel (%p479) target = $region12
      $region11: #{tpu_custom_call.1} parent=5 // pred_region
        %s483 = ssub.s32 %s25, 1
        // Predicated region
        $region13: #{tpu_custom_call.1} parent=11 // pred_check
          %p484 = pneg %p63
        $region14: #{tpu_custom_call.1} parent=11 // pred_check_branch
          %486 = sbr.rel (%p484) target = $region16
        $region15: #{tpu_custom_call.1} parent=11 // pred_region
          %s487 = smul.u32 2, %s34
          %489 = vsyncadd [#allocation4], 0
          %s490 = smul.addr %s487, 8
          %s491 = scalar_lea.hbm %s0, %s490
          %s492 = sshll.u32 %s491, 4
          %s493 = int_to_ptr.hbm [resolvable:$true] %s492
          %s494 = sshll.u32 [#allocation3], 4
          %s495 = int_to_ptr.vmem [resolvable:$true] %s494
          %500 = dma.hbm_to_vmem [thread:$0]  %s493, 256, %s495, [#allocation4], 128, 128, 8
        $region16: #{tpu_custom_call.1} parent=11 // pred_fallthru
          _
        // Predicated region
        $region17: #{tpu_custom_call.1} parent=11 // pred_check
          %p501 = pneg %p89
        $region18: #{tpu_custom_call.1} parent=11 // pred_check_branch
          %503 = sbr.rel (%p501) target = $region20
        $region19: #{tpu_custom_call.1} parent=11 // pred_region
          %s504 = smul.u32 2, %s34
          %506 = vsyncadd [#allocation7], 0
          %s507 = scalar_lea.hbm %s1, %s504
          %s508 = sshll.u32 %s507, 4
          %s509 = int_to_ptr.hbm [resolvable:$true] %s508
          %s510 = sshll.u32 [#allocation6], 4
          %s511 = int_to_ptr.vmem [resolvable:$true] %s510
          %516 = dma.hbm_to_vmem [thread:$0]  %s509, 32, %s511, [#allocation7], 16, 16, 1
        $region20: #{tpu_custom_call.1} parent=11 // pred_fallthru
          _
        // Predicated region
        $region21: #{tpu_custom_call.1} parent=11 // pred_check
          %p517 = pneg %p422
        $region22: #{tpu_custom_call.1} parent=11 // pred_check_branch
          %519 = sbr.rel (%p517) target = $region24
        $region23: #{tpu_custom_call.1} parent=11 // pred_region
          _
        $region24: #{tpu_custom_call.1} parent=11 // pred_fallthru
          _
        // Predicated region
        $region25: #{tpu_custom_call.1} parent=11 // pred_check
          %p520 = pneg %p443
        $region26: #{tpu_custom_call.1} parent=11 // pred_check_branch
          %522 = sbr.rel (%p520) target = $region28
        $region27: #{tpu_custom_call.1} parent=11 // pred_region
          _
        $region28: #{tpu_custom_call.1} parent=11 // pred_fallthru
          _
      $region12: #{tpu_custom_call.1} parent=5 // pred_fallthru
        _
      %p523 = scmp.lt.s32.totalorder %s25, 2
      // Predicated region
      $region29: #{tpu_custom_call.1} parent=5 // pred_check
        %p524 = pneg %p523
      $region30: #{tpu_custom_call.1} parent=5 // pred_check_branch
        %526 = sbr.rel (%p524) target = $region32
      $region31: #{tpu_custom_call.1} parent=5 // pred_region
        // Predicated region
        $region33: #{tpu_custom_call.1} parent=31 // pred_check
          %p527 = pneg %p109
        $region34: #{tpu_custom_call.1} parent=31 // pred_check_branch
          %529 = sbr.rel (%p527) target = $region36
        $region35: #{tpu_custom_call.1} parent=31 // pred_region
          %p530 = scmp.lt.s32.totalorder %s33, 1
          %s531 = scalar_select %p530, %s33, 1
          %s532 = smul.addr %s531, 4
          %s533 = smul.addr %s532, 4
          %s534 = scalar_lea.vmem %s2, %s533
        $region36: #{tpu_custom_call.1} parent=31 // pred_fallthru
          _
        // Predicated region
        $region37: #{tpu_custom_call.1} parent=31 // pred_check
          %p535 = pneg %p135
        $region38: #{tpu_custom_call.1} parent=31 // pred_check_branch
          %537 = sbr.rel (%p535) target = $region40
        $region39: #{tpu_custom_call.1} parent=31 // pred_region
          %s538 = sand.u32 %s25, 1
          %s539 = scalar_lea.sflag [#allocation4], %s538
          %s540 = sand.u32 %s125, 1
          %s541 = scalar_lea.vmem [#allocation8], %s540
          %543 = vsyncadd %s539, 0
          %s544 = scalar_lea.hbm %s3, %s33
          %s546 = sshll.u32 %s544, 4
          %s547 = int_to_ptr.hbm [resolvable:$true] %s546
          %s548 = sshll.u32 %s541, 4
          %s549 = int_to_ptr.vmem [resolvable:$true] %s548
          %551 = dma.hbm_to_vmem [thread:$0]  %s547, 16, %s549, %s539
        $region40: #{tpu_custom_call.1} parent=31 // pred_fallthru
          _
        // Predicated region
        $region41: #{tpu_custom_call.1} parent=31 // pred_check
          %p552 = pneg %p161
        $region42: #{tpu_custom_call.1} parent=31 // pred_check_branch
          %554 = sbr.rel (%p552) target = $region44
        $region43: #{tpu_custom_call.1} parent=31 // pred_region
          %p555 = scmp.lt.s32.totalorder %s33, 1
          %s556 = scalar_select %p555, %s33, 1
          %s557 = smul.addr %s556, 4
          %s558 = smul.addr %s557, 4
          %s559 = scalar_lea.vmem %s4, %s558
        $region44: #{tpu_custom_call.1} parent=31 // pred_fallthru
          _
        // Predicated region
        $region45: #{tpu_custom_call.1} parent=31 // pred_check
          %p560 = pneg %p187
        $region46: #{tpu_custom_call.1} parent=31 // pred_check_branch
          %562 = sbr.rel (%p560) target = $region48
        $region47: #{tpu_custom_call.1} parent=31 // pred_region
          %p563 = scmp.lt.s32.totalorder %s33, 1
          %s564 = scalar_select %p563, %s33, 1
          %s565 = scalar_lea.vmem %s5, %s564
        $region48: #{tpu_custom_call.1} parent=31 // pred_fallthru
          _
        // Predicated region
        $region49: #{tpu_custom_call.1} parent=31 // pred_check
          %p566 = pneg %p213
        $region50: #{tpu_custom_call.1} parent=31 // pred_check_branch
          %568 = sbr.rel (%p566) target = $region52
        $region51: #{tpu_custom_call.1} parent=31 // pred_region
          %p569 = scmp.lt.s32.totalorder %s33, 1
          %s570 = scalar_select %p569, %s33, 1
          %s571 = scalar_lea.vmem %s6, %s570
        $region52: #{tpu_custom_call.1} parent=31 // pred_fallthru
          _
        // Predicated region
        $region53: #{tpu_custom_call.1} parent=31 // pred_check
          %p572 = pneg %p239
        $region54: #{tpu_custom_call.1} parent=31 // pred_check_branch
          %574 = sbr.rel (%p572) target = $region56
        $region55: #{tpu_custom_call.1} parent=31 // pred_region
          %s575 = sand.u32 %s25, 1
          %s576 = scalar_lea.sflag [#allocation4], %s575
          %s577 = sand.u32 %s229, 1
          %s578 = scalar_lea.vmem [#allocation9], %s577
          %580 = vsyncadd %s576, 0
          %s581 = scalar_lea.hbm %s7, %s33
          %s583 = sshll.u32 %s581, 4
          %s584 = int_to_ptr.hbm [resolvable:$true] %s583
          %s585 = sshll.u32 %s578, 4
          %s586 = int_to_ptr.vmem [resolvable:$true] %s585
          %588 = dma.hbm_to_vmem [thread:$0]  %s584, 16, %s586, %s576
        $region56: #{tpu_custom_call.1} parent=31 // pred_fallthru
          _
        // Predicated region
        $region57: #{tpu_custom_call.1} parent=31 // pred_check
          %p589 = pneg %p265
        $region58: #{tpu_custom_call.1} parent=31 // pred_check_branch
          %591 = sbr.rel (%p589) target = $region60
        $region59: #{tpu_custom_call.1} parent=31 // pred_region
          %p592 = scmp.lt.s32.totalorder %s33, 1
          %s593 = scalar_select %p592, %s33, 1
          %s594 = scalar_lea.vmem %s8, %s593
        $region60: #{tpu_custom_call.1} parent=31 // pred_fallthru
          _
        // Predicated region
        $region61: #{tpu_custom_call.1} parent=31 // pred_check
          %p595 = pneg %p291
        $region62: #{tpu_custom_call.1} parent=31 // pred_check_branch
          %597 = sbr.rel (%p595) target = $region64
        $region63: #{tpu_custom_call.1} parent=31 // pred_region
          %s598 = sand.u32 %s25, 1
          %s599 = scalar_lea.sflag [#allocation4], %s598
          %s600 = sand.u32 %s281, 1
          %s601 = scalar_lea.vmem [#allocation10], %s600
          %603 = vsyncadd %s599, 0
          %s604 = scalar_lea.hbm %s9, %s33
          %s606 = sshll.u32 %s604, 4
          %s607 = int_to_ptr.hbm [resolvable:$true] %s606
          %s608 = sshll.u32 %s601, 4
          %s609 = int_to_ptr.vmem [resolvable:$true] %s608
          %611 = dma.hbm_to_vmem [thread:$0]  %s607, 16, %s609, %s599
        $region64: #{tpu_custom_call.1} parent=31 // pred_fallthru
          _
        // Predicated region
        $region65: #{tpu_custom_call.1} parent=31 // pred_check
          %p612 = pneg %p317
        $region66: #{tpu_custom_call.1} parent=31 // pred_check_branch
          %614 = sbr.rel (%p612) target = $region68
        $region67: #{tpu_custom_call.1} parent=31 // pred_region
          %p615 = scmp.lt.s32.totalorder %s33, 1
          %s616 = scalar_select %p615, %s33, 1
          %s617 = smul.addr %s616, 4
          %s618 = smul.addr %s617, 4
          %s619 = scalar_lea.vmem %s10, %s618
        $region68: #{tpu_custom_call.1} parent=31 // pred_fallthru
          _
        // Predicated region
        $region69: #{tpu_custom_call.1} parent=31 // pred_check
          %p620 = pneg %p343
        $region70: #{tpu_custom_call.1} parent=31 // pred_check_branch
          %622 = sbr.rel (%p620) target = $region72
        $region71: #{tpu_custom_call.1} parent=31 // pred_region
          %p623 = scmp.lt.s32.totalorder %s33, 1
          %s624 = scalar_select %p623, %s33, 1
          %s625 = scalar_lea.vmem %s11, %s624
        $region72: #{tpu_custom_call.1} parent=31 // pred_fallthru
          _
        // Predicated region
        $region73: #{tpu_custom_call.1} parent=31 // pred_check
          %p626 = pneg %p369
        $region74: #{tpu_custom_call.1} parent=31 // pred_check_branch
          %628 = sbr.rel (%p626) target = $region76
        $region75: #{tpu_custom_call.1} parent=31 // pred_region
          %p629 = scmp.lt.s32.totalorder %s33, 1
          %s630 = scalar_select %p629, %s33, 1
          %s631 = smul.addr %s630, 8
          %s632 = smul.addr %s631, 4
          %s633 = scalar_lea.vmem %s12, %s632
        $region76: #{tpu_custom_call.1} parent=31 // pred_fallthru
          _
        // Predicated region
        $region77: #{tpu_custom_call.1} parent=31 // pred_check
          %p634 = pneg %p395
        $region78: #{tpu_custom_call.1} parent=31 // pred_check_branch
          %636 = sbr.rel (%p634) target = $region80
        $region79: #{tpu_custom_call.1} parent=31 // pred_region
          %p637 = scmp.lt.s32.totalorder %s33, 1
          %s638 = scalar_select %p637, %s33, 1
          %s639 = scalar_lea.vmem %s13, %s638
        $region80: #{tpu_custom_call.1} parent=31 // pred_fallthru
          _
      $region32: #{tpu_custom_call.1} parent=5 // pred_fallthru
        _
      %p640 = scmp.le.s32.totalorder 1, %s25
      %p641 = scmp.lt.s32.totalorder %s25, 3
      %p642 = pnand %p640, %p641
      %p643 = pneg %p642
      // Predicated region
      $region81: #{tpu_custom_call.1} parent=5 // pred_check
        _
      $region82: #{tpu_custom_call.1} parent=5 // pred_check_branch
        %645 = sbr.rel (%p642) target = $region84
      $region83: #{tpu_custom_call.1} parent=5 // pred_region
        %s646 = ssub.s32 %s25, 1
        // Predicated region
        $region85: #{tpu_custom_call.1} parent=83 // pred_check
          %p647 = pneg %p63
        $region86: #{tpu_custom_call.1} parent=83 // pred_check_branch
          %649 = sbr.rel (%p647) target = $region88
        $region87: #{tpu_custom_call.1} parent=83 // pred_region
          %651 = dma.done [#allocation4], 256
        $region88: #{tpu_custom_call.1} parent=83 // pred_fallthru
          _
        // Predicated region
        $region89: #{tpu_custom_call.1} parent=83 // pred_check
          %p652 = pneg %p89
        $region90: #{tpu_custom_call.1} parent=83 // pred_check_branch
          %654 = sbr.rel (%p652) target = $region92
        $region91: #{tpu_custom_call.1} parent=83 // pred_region
          %656 = dma.done [#allocation7], 32
        $region92: #{tpu_custom_call.1} parent=83 // pred_fallthru
          _
        %s657 = sand.u32 %s30, 1
        %s658 = scalar_lea.sflag [#allocation4], %s657
        %s659 = sand.u32 %s128, 1
        %s660 = scalar_lea.vmem [#allocation8], %s659
        // Predicated region
        $region93: #{tpu_custom_call.1} parent=83 // pred_check
          %p661 = pneg %p141
        $region94: #{tpu_custom_call.1} parent=83 // pred_check_branch
          %663 = sbr.rel (%p661) target = $region96
        $region95: #{tpu_custom_call.1} parent=83 // pred_region
          %665 = dma.done %s658, 16
        $region96: #{tpu_custom_call.1} parent=83 // pred_fallthru
          _
        %s666 = sand.u32 %s30, 1
        %s667 = scalar_lea.sflag [#allocation4], %s666
        %s668 = sand.u32 %s232, 1
        %s669 = scalar_lea.vmem [#allocation9], %s668
        // Predicated region
        $region97: #{tpu_custom_call.1} parent=83 // pred_check
          %p670 = pneg %p245
        $region98: #{tpu_custom_call.1} parent=83 // pred_check_branch
          %672 = sbr.rel (%p670) target = $region100
        $region99: #{tpu_custom_call.1} parent=83 // pred_region
          %674 = dma.done %s667, 16
        $region100: #{tpu_custom_call.1} parent=83 // pred_fallthru
          _
        %s675 = sand.u32 %s30, 1
        %s676 = scalar_lea.sflag [#allocation4], %s675
        %s677 = sand.u32 %s284, 1
        %s678 = scalar_lea.vmem [#allocation10], %s677
        // Predicated region
        $region101: #{tpu_custom_call.1} parent=83 // pred_check
          %p679 = pneg %p297
        $region102: #{tpu_custom_call.1} parent=83 // pred_check_branch
          %681 = sbr.rel (%p679) target = $region104
        $region103: #{tpu_custom_call.1} parent=83 // pred_region
          %683 = dma.done %s676, 16
        $region104: #{tpu_custom_call.1} parent=83 // pred_fallthru
          _
        %p684 = pneg %p63
        %p685 = pneg %p60
        %p686 = pneg %p89
        %p687 = pneg %p86
        %p688 = scmp.lt.s32.totalorder %s35, 1
        %s689 = scalar_select %p688, %s35, 1
        %s690 = smul.addr %s689, 4
        %s691 = smul.addr %s690, 4
        %s692 = scalar_lea.vmem %s2, %s691
        %p693 = pneg %p115
        %p694 = pneg %p112
        %s695 = sand.u32 %s30, 1
        %s696 = scalar_lea.sflag [#allocation4], %s695
        %s697 = sand.u32 %s128, 1
        %s698 = scalar_lea.vmem [#allocation8], %s697
        %p699 = pneg %p141
        %p700 = pneg %p138
        %p701 = scmp.lt.s32.totalorder %s35, 1
        %s702 = scalar_select %p701, %s35, 1
        %s703 = smul.addr %s702, 4
        %s704 = smul.addr %s703, 4
        %s705 = scalar_lea.vmem %s4, %s704
        %p706 = pneg %p167
        %p707 = pneg %p164
        %p708 = scmp.lt.s32.totalorder %s35, 1
        %s709 = scalar_select %p708, %s35, 1
        %s710 = scalar_lea.vmem %s5, %s709
        %p711 = pneg %p193
        %p712 = pneg %p190
        %p713 = scmp.lt.s32.totalorder %s35, 1
        %s714 = scalar_select %p713, %s35, 1
        %s715 = scalar_lea.vmem %s6, %s714
        %p716 = pneg %p219
        %p717 = pneg %p216
        %s718 = sand.u32 %s30, 1
        %s719 = scalar_lea.sflag [#allocation4], %s718
        %s720 = sand.u32 %s232, 1
        %s721 = scalar_lea.vmem [#allocation9], %s720
        %p722 = pneg %p245
        %p723 = pneg %p242
        %p724 = scmp.lt.s32.totalorder %s35, 1
        %s725 = scalar_select %p724, %s35, 1
        %s726 = scalar_lea.vmem %s8, %s725
        %p727 = pneg %p271
        %p728 = pneg %p268
        %s729 = sand.u32 %s30, 1
        %s730 = scalar_lea.sflag [#allocation4], %s729
        %s731 = sand.u32 %s284, 1
        %s732 = scalar_lea.vmem [#allocation10], %s731
        %p733 = pneg %p297
        %p734 = pneg %p294
        %p735 = scmp.lt.s32.totalorder %s35, 1
        %s736 = scalar_select %p735, %s35, 1
        %s737 = smul.addr %s736, 4
        %s738 = smul.addr %s737, 4
        %s739 = scalar_lea.vmem %s10, %s738
        %p740 = pneg %p323
        %p741 = pneg %p320
        %p742 = scmp.lt.s32.totalorder %s35, 1
        %s743 = scalar_select %p742, %s35, 1
        %s744 = scalar_lea.vmem %s11, %s743
        %p745 = pneg %p349
        %p746 = pneg %p346
        %p747 = scmp.lt.s32.totalorder %s35, 1
        %s748 = scalar_select %p747, %s35, 1
        %s749 = smul.addr %s748, 8
        %s750 = smul.addr %s749, 4
        %s751 = scalar_lea.vmem %s12, %s750
        %p752 = pneg %p375
        %p753 = pneg %p372
        %p754 = scmp.lt.s32.totalorder %s35, 1
        %s755 = scalar_select %p754, %s35, 1
        %s756 = scalar_lea.vmem %s13, %s755
        %p757 = pneg %p401
        %p758 = pneg %p398
        %p759 = pneg %p422
        %p760 = pneg %p419
        %p761 = pneg %p443
        %p762 = pneg %p440
        %p763 = pneg %p469
        %p764 = pneg %p466
        %s765 = smul.u32 2, %s34
        %s766 = smul.u32 2, %s34
        %p767 = scmp.lt.s32.totalorder %s35, 1
        %s768 = scalar_select %p767, %s35, 1
        %s769 = smul.addr %s768, 4
        %s770 = smul.addr %s769, 4
        %s771 = scalar_lea.vmem %s2, %s770
        %p772 = scmp.lt.s32.totalorder %s35, 1
        %s773 = scalar_select %p772, %s35, 1
        %s774 = smul.addr %s773, 4
        %s775 = smul.addr %s774, 4
        %s776 = scalar_lea.vmem %s4, %s775
        %p777 = scmp.lt.s32.totalorder %s35, 1
        %s778 = scalar_select %p777, %s35, 1
        %s779 = scalar_lea.vmem %s5, %s778
        %p780 = scmp.lt.s32.totalorder %s35, 1
        %s781 = scalar_select %p780, %s35, 1
        %s782 = scalar_lea.vmem %s6, %s781
        %p783 = scmp.lt.s32.totalorder %s35, 1
        %s784 = scalar_select %p783, %s35, 1
        %s785 = scalar_lea.vmem %s8, %s784
        %p786 = scmp.lt.s32.totalorder %s35, 1
        %s787 = scalar_select %p786, %s35, 1
        %s788 = smul.addr %s787, 4
        %s789 = smul.addr %s788, 4
        %s790 = scalar_lea.vmem %s10, %s789
        %p791 = scmp.lt.s32.totalorder %s35, 1
        %s792 = scalar_select %p791, %s35, 1
        %s793 = scalar_lea.vmem %s11, %s792
        %p794 = scmp.lt.s32.totalorder %s35, 1
        %s795 = scalar_select %p794, %s35, 1
        %s796 = smul.addr %s795, 8
        %s797 = smul.addr %s796, 4
        %s798 = scalar_lea.vmem %s12, %s797
        %p799 = scmp.lt.s32.totalorder %s35, 1
        %s800 = scalar_select %p799, %s35, 1
        %s801 = scalar_lea.vmem %s13, %s800
        %s802 = smul.u32 2, %s34
        %p804 = scmp.eq.s32.totalorder %s35, 0
        // Predicated region
        $region105: #{tpu_custom_call.1} parent=83 // pred_check
          %p805 = pneg %p804
        $region106: #{tpu_custom_call.1} parent=83 // pred_check_branch
          %807 = sbr.rel (%p805) target = $region108
        $region107: #{tpu_custom_call.1} parent=83 // pred_region
          %v808 = vld [vmem:[#allocation3] sm:$0xff]
          %v809 = vld [vmem:[#allocation3 + $0x8] sm:$0xff]
          %vm810 = vcmask 261120
          %811 = vst.msk [vmem:[#allocation2] sm:$0xff] %vm810, %v808
          %812 = vst.msk [vmem:[#allocation2 + $0x8] sm:$0xff] %vm810, %v809
        $region108: #{tpu_custom_call.1} parent=83 // pred_fallthru
          _
        %v813 = vld [vmem:[#allocation2] sm:$0xff]
        %v814 = vld [vmem:[#allocation2 + $0x8] sm:$0xff]
        %v815 = vld [vmem:[#allocation6] sm:$0x1]
        %v816 = vld [vmem:[#allocation6 + $0x1] sm:$0x1]
        %vm817 = vcmp.eq.f32.partialorder %v815, 0.0
        %vm818 = vcmp.eq.f32.partialorder %v816, 0.0
        %v819 = vsel %vm817, -1e+09, 0.0
        %v820 = vsel %vm818, -1e+09, 0.0
        %v821 = vld [vmem:[%s782] sm:$0x1]
        %v822 = vld [vmem:[%s669] sm:$0x1]
        %vm823 = vcmask 261120
        %v824 = vsel %vm823, %v813, 0.0
        %825 = vadd.xlane.f32.xlu0 %v824
        %v826 = vpop.xlane.xlu0 %825
        %v827 = vsel %vm823, %v814, 0.0
        %828 = vadd.xlane.f32.xlu0 %v827
        %v829 = vpop.xlane.xlu0 %828
        %v830 = vrcp.pop 32.0
        %v831 = vmul.f32 32.0, %v830
        %v832 = vsub.f32 1.0, %v831
        %v833 = vmul.f32 %v830, %v832
        %v834 = vadd.f32 %v830, %v833
        %vm835 = vweird.f32 %v830
        %v836 = vsel %vm835, %v830, %v834
        %v837 = vmul.f32 %v826, %v836
        %v838 = vmul.f32 %v829, %v836
        %v839 = vsub.f32 %v813, %v837
        %v840 = vsub.f32 %v814, %v838
        %v841 = vmul.f32 %v839, %v839
        %v842 = vmul.f32 %v840, %v840
        %v843 = vsel %vm823, %v841, 0.0
        %844 = vadd.xlane.f32.xlu0 %v843
        %v845 = vpop.xlane.xlu0 %844
        %v846 = vsel %vm823, %v842, 0.0
        %847 = vadd.xlane.f32.xlu0 %v846
        %v848 = vpop.xlane.xlu0 %847
        %v849 = vmul.f32 %v845, 0.032258064
        %v850 = vmul.f32 %v848, 0.032258064
        %v852 = vperm.slane %v821, 0
        %v854 = vmul.f32 %v852, %v839
        %v855 = vmul.f32 %v852, %v840
        %v856 = vrsqrt.pop %v849
        %v857 = vmul.f32 %v856, %v849
        %v858 = vmul.f32 %v857, %v856
        %v859 = vmul.f32 0.5, %v858
        %v860 = vsub.f32 1.5, %v859
        %v861 = vmul.f32 %v856, %v860
        %v862 = vmul.f32 %v849, %v861
        %vm863 = vcmp.eq.f32.partialorder %v849, inf
        %v864 = vsel %vm863, %v849, %v862
        %vm865 = vcmp.eq.f32.partialorder %v849, 0.0
        %v866 = vand.u32 %v849, 2147483648
        %v867 = vsel %vm865, %v866, %v864
        %v868 = vrsqrt.pop %v850
        %v869 = vmul.f32 %v868, %v850
        %v870 = vmul.f32 %v869, %v868
        %v871 = vmul.f32 0.5, %v870
        %v872 = vsub.f32 1.5, %v871
        %v873 = vmul.f32 %v868, %v872
        %v874 = vmul.f32 %v850, %v873
        %vm875 = vcmp.eq.f32.partialorder %v850, inf
        %v876 = vsel %vm875, %v850, %v874
        %vm877 = vcmp.eq.f32.partialorder %v850, 0.0
        %v878 = vand.u32 %v850, 2147483648
        %v879 = vsel %vm877, %v878, %v876
        %v880 = vadd.f32 %v867, 1e-06
        %v881 = vadd.f32 %v879, 1e-06
        %v882 = vrcp.pop %v880
        %v883 = vmul.f32 %v880, %v882
        %v884 = vsub.f32 1.0, %v883
        %v885 = vmul.f32 %v882, %v884
        %v886 = vadd.f32 %v882, %v885
        %vm887 = vweird.f32 %v880
        %vm888 = vweird.f32 %v882
        %vm889 = vmor %vm887, %vm888
        %v890 = vsel %vm889, %v882, %v886
        %v891 = vand.u32 2147483647, %v880
        %vm892 = vcmp.eq.f32.partialorder %v891, 8.507059e+37
        %v893 = vand.u32 %v880, 2147483648
        %v894 = vor.u32 1.1754944e-38, %v893
        %v895 = vsel %vm892, %v894, %v890
        %v896 = vmul.f32 %v854, %v895
        %v897 = vrcp.pop %v881
        %v898 = vmul.f32 %v881, %v897
        %v899 = vsub.f32 1.0, %v898
        %v900 = vmul.f32 %v897, %v899
        %v901 = vadd.f32 %v897, %v900
        %vm902 = vweird.f32 %v881
        %vm903 = vweird.f32 %v897
        %vm904 = vmor %vm902, %vm903
        %v905 = vsel %vm904, %v897, %v901
        %v906 = vand.u32 2147483647, %v881
        %vm907 = vcmp.eq.f32.partialorder %v906, 8.507059e+37
        %v908 = vand.u32 %v881, 2147483648
        %v909 = vor.u32 1.1754944e-38, %v908
        %v910 = vsel %vm907, %v909, %v905
        %v911 = vmul.f32 %v855, %v910
        %v913 = vperm.slane %v822, 0
        %v915 = vadd.f32 %v896, %v913
        %v916 = vadd.f32 %v911, %v913
        %v917 = vpack.c.bf16 %v916, %v915
        %v918 = vld [vmem:[%s771] sm:$0xf]
        %v919 = vld [vmem:[%s771 + $0x4] sm:$0xf]
        %v920 = vld [vmem:[%s771 + $0x8] sm:$0xf]
        %v921 = vld [vmem:[%s771 + $0xc] sm:$0xf]
        %v922 = vld [vmem:[%s660] sm:$0x1]
        %v924 = vperm.slane %v922, 0
        %v930 = vunpack.c.l.b16 %v918
        %v931 = vunpack.c.l.b16 %v919
        %v932 = vunpack.c.l.b16 %v920
        %v933 = vunpack.c.l.b16 %v921
        %v934 = vpack.c.b16 %v931, %v930
        %v935 = vpack.c.b16 %v933, %v932
        %v939 = vsel %vm823, %v917, 0
        %941 = vmatpush.bf16.msra.mxu0 0
        %942 = vmatpush.bf16.msra.mxu0 0
        %943 = vmatpush.bf16.msra.mxu0 0
        %944 = vmatpush.bf16.msra.mxu0 0
        %945 = vmatpush.bf16.msra.mxu0 0
        %946 = vmatpush.bf16.msra.mxu0 0
        %947 = vmatpush.bf16.msra.mxu0 %v935
        %948 = vmatpush.bf16.msra.mxu0 %v934
        %949 = vmatmul.bf16.gmra.mxu0 %v939
        %v950 = vpop.f32.mrf.mxu0
        %v951 = vadd.f32 %v924, %v950
        %v952 = vpop.f32.mrf.mxu0
        %v953 = vadd.f32 %v924, %v952
        %954 = vdwg.mxu0
        %956 = vrot.lane.b32.xlu0 %v951, 120
        %v957 = vpop.permute.xlu0 %956
        %959 = vrot.lane.b32.xlu0 %v951, 112
        %v960 = vpop.permute.xlu0 %959
        %962 = vrot.lane.b32.xlu0 %v951, 104
        %v963 = vpop.permute.xlu0 %962
        %966 = vrot.lane.b32.xlu0 %v953, 120
        %v967 = vpop.permute.xlu0 %966
        %969 = vrot.lane.b32.xlu0 %v953, 112
        %v970 = vpop.permute.xlu0 %969
        %972 = vrot.lane.b32.xlu0 %v953, 104
        %v973 = vpop.permute.xlu0 %972
        %v975 = vpack.c.bf16 %v951, %v951
        %v976 = vpack.c.bf16 %v957, %v957
        %v977 = vpack.c.bf16 %v960, %v960
        %v978 = vpack.c.bf16 %v963, %v963
        %v979 = vpack.c.bf16 %v953, %v953
        %v980 = vpack.c.bf16 %v967, %v967
        %v981 = vpack.c.bf16 %v970, %v970
        %v982 = vpack.c.bf16 %v973, %v973
        %v985 = vperm.slane %v819, 0
        %v986 = vperm.slane %v820, 0
        %v990 = vunpack.c.l.b16 %v975
        %v991 = vpack.c.b16 %v990, %v990
        %992 = vrot.lane.b32.xlu0 %v991, 96
        %v993 = vpop.permute.xlu0 %992
        %vm994 = vcmask 64512
        %v996 = vsel %vm994, %v975, 0
        %v999 = vsel %vm994, %v993, 0
        %1001 = vmatpush.bf16.xpose.msra.mxu0 0
        %1002 = vmatpush.bf16.xpose.msra.mxu0 0
        %1003 = vmatpush.bf16.xpose.msra.mxu0 0
        %1004 = vmatpush.bf16.xpose.msra.mxu0 0
        %1005 = vmatpush.bf16.xpose.msra.mxu0 0
        %1006 = vmatpush.bf16.xpose.msra.mxu0 0
        %1007 = vmatpush.bf16.xpose.msra.mxu0 0
        %1008 = vmatpush.bf16.xpose.msra.mxu0 %v999
        %1009 = vmatmul.bf16.gmra.mxu0 %v996
        %v1010 = vpop.f32.mrf.mxu0
        %v1011 = vadd.f32 %v985, %v1010
        %v1012 = vpop.f32.mrf.mxu0
        %1013 = vdwg.mxu0
        %v1015 = vunpack.c.l.b16 %v976
        %v1016 = vpack.c.b16 %v1015, %v1015
        %1017 = vrot.lane.b32.xlu0 %v1016, 96
        %v1018 = vpop.permute.xlu0 %1017
        %v1020 = vsel %vm994, %v976, 0
        %v1023 = vsel %vm994, %v1018, 0
        %1025 = vmatpush.bf16.xpose.msra.mxu0 0
        %1026 = vmatpush.bf16.xpose.msra.mxu0 0
        %1027 = vmatpush.bf16.xpose.msra.mxu0 0
        %1028 = vmatpush.bf16.xpose.msra.mxu0 0
        %1029 = vmatpush.bf16.xpose.msra.mxu0 0
        %1030 = vmatpush.bf16.xpose.msra.mxu0 0
        %1031 = vmatpush.bf16.xpose.msra.mxu0 0
        %1032 = vmatpush.bf16.xpose.msra.mxu0 %v1023
        %1033 = vmatmul.bf16.gmra.mxu0 %v1020
        %v1034 = vpop.f32.mrf.mxu0
        %v1035 = vadd.f32 %v985, %v1034
        %v1036 = vpop.f32.mrf.mxu0
        %1037 = vdwg.mxu0
        %v1039 = vunpack.c.l.b16 %v977
        %v1040 = vpack.c.b16 %v1039, %v1039
        %1041 = vrot.lane.b32.xlu0 %v1040, 96
        %v1042 = vpop.permute.xlu0 %1041
        %v1044 = vsel %vm994, %v977, 0
        %v1047 = vsel %vm994, %v1042, 0
        %1049 = vmatpush.bf16.xpose.msra.mxu0 0
        %1050 = vmatpush.bf16.xpose.msra.mxu0 0
        %1051 = vmatpush.bf16.xpose.msra.mxu0 0
        %1052 = vmatpush.bf16.xpose.msra.mxu0 0
        %1053 = vmatpush.bf16.xpose.msra.mxu0 0
        %1054 = vmatpush.bf16.xpose.msra.mxu0 0
        %1055 = vmatpush.bf16.xpose.msra.mxu0 0
        %1056 = vmatpush.bf16.xpose.msra.mxu0 %v1047
        %1057 = vmatmul.bf16.gmra.mxu0 %v1044
        %v1058 = vpop.f32.mrf.mxu0
        %v1059 = vadd.f32 %v985, %v1058
        %v1060 = vpop.f32.mrf.mxu0
        %1061 = vdwg.mxu0
        %v1063 = vunpack.c.l.b16 %v978
        %v1064 = vpack.c.b16 %v1063, %v1063
        %1065 = vrot.lane.b32.xlu0 %v1064, 96
        %v1066 = vpop.permute.xlu0 %1065
        %v1068 = vsel %vm994, %v978, 0
        %v1071 = vsel %vm994, %v1066, 0
        %1073 = vmatpush.bf16.xpose.msra.mxu0 0
        %1074 = vmatpush.bf16.xpose.msra.mxu0 0
        %1075 = vmatpush.bf16.xpose.msra.mxu0 0
        %1076 = vmatpush.bf16.xpose.msra.mxu0 0
        %1077 = vmatpush.bf16.xpose.msra.mxu0 0
        %1078 = vmatpush.bf16.xpose.msra.mxu0 0
        %1079 = vmatpush.bf16.xpose.msra.mxu0 0
        %1080 = vmatpush.bf16.xpose.msra.mxu0 %v1071
        %1081 = vmatmul.bf16.gmra.mxu0 %v1068
        %v1082 = vpop.f32.mrf.mxu0
        %v1083 = vadd.f32 %v985, %v1082
        %v1084 = vpop.f32.mrf.mxu0
        %1085 = vdwg.mxu0
        %v1087 = vunpack.c.l.b16 %v979
        %v1088 = vpack.c.b16 %v1087, %v1087
        %1089 = vrot.lane.b32.xlu0 %v1088, 96
        %v1090 = vpop.permute.xlu0 %1089
        %v1092 = vsel %vm994, %v979, 0
        %v1095 = vsel %vm994, %v1090, 0
        %1097 = vmatpush.bf16.xpose.msra.mxu0 0
        %1098 = vmatpush.bf16.xpose.msra.mxu0 0
        %1099 = vmatpush.bf16.xpose.msra.mxu0 0
        %1100 = vmatpush.bf16.xpose.msra.mxu0 0
        %1101 = vmatpush.bf16.xpose.msra.mxu0 0
        %1102 = vmatpush.bf16.xpose.msra.mxu0 0
        %1103 = vmatpush.bf16.xpose.msra.mxu0 0
        %1104 = vmatpush.bf16.xpose.msra.mxu0 %v1095
        %1105 = vmatmul.bf16.gmra.mxu0 %v1092
        %v1106 = vpop.f32.mrf.mxu0
        %v1107 = vadd.f32 %v986, %v1106
        %v1108 = vpop.f32.mrf.mxu0
        %1109 = vdwg.mxu0
        %v1111 = vunpack.c.l.b16 %v980
        %v1112 = vpack.c.b16 %v1111, %v1111
        %1113 = vrot.lane.b32.xlu0 %v1112, 96
        %v1114 = vpop.permute.xlu0 %1113
        %v1116 = vsel %vm994, %v980, 0
        %v1119 = vsel %vm994, %v1114, 0
        %1121 = vmatpush.bf16.xpose.msra.mxu0 0
        %1122 = vmatpush.bf16.xpose.msra.mxu0 0
        %1123 = vmatpush.bf16.xpose.msra.mxu0 0
        %1124 = vmatpush.bf16.xpose.msra.mxu0 0
        %1125 = vmatpush.bf16.xpose.msra.mxu0 0
        %1126 = vmatpush.bf16.xpose.msra.mxu0 0
        %1127 = vmatpush.bf16.xpose.msra.mxu0 0
        %1128 = vmatpush.bf16.xpose.msra.mxu0 %v1119
        %1129 = vmatmul.bf16.gmra.mxu0 %v1116
        %v1130 = vpop.f32.mrf.mxu0
        %v1131 = vadd.f32 %v986, %v1130
        %v1132 = vpop.f32.mrf.mxu0
        %1133 = vdwg.mxu0
        %v1135 = vunpack.c.l.b16 %v981
        %v1136 = vpack.c.b16 %v1135, %v1135
        %1137 = vrot.lane.b32.xlu0 %v1136, 96
        %v1138 = vpop.permute.xlu0 %1137
        %v1140 = vsel %vm994, %v981, 0
        %v1143 = vsel %vm994, %v1138, 0
        %1145 = vmatpush.bf16.xpose.msra.mxu0 0
        %1146 = vmatpush.bf16.xpose.msra.mxu0 0
        %1147 = vmatpush.bf16.xpose.msra.mxu0 0
        %1148 = vmatpush.bf16.xpose.msra.mxu0 0
        %1149 = vmatpush.bf16.xpose.msra.mxu0 0
        %1150 = vmatpush.bf16.xpose.msra.mxu0 0
        %1151 = vmatpush.bf16.xpose.msra.mxu0 0
        %1152 = vmatpush.bf16.xpose.msra.mxu0 %v1143
        %1153 = vmatmul.bf16.gmra.mxu0 %v1140
        %v1154 = vpop.f32.mrf.mxu0
        %v1155 = vadd.f32 %v986, %v1154
        %v1156 = vpop.f32.mrf.mxu0
        %1157 = vdwg.mxu0
        %v1159 = vunpack.c.l.b16 %v982
        %v1160 = vpack.c.b16 %v1159, %v1159
        %1161 = vrot.lane.b32.xlu0 %v1160, 96
        %v1162 = vpop.permute.xlu0 %1161
        %v1164 = vsel %vm994, %v982, 0
        %v1167 = vsel %vm994, %v1162, 0
        %1169 = vmatpush.bf16.xpose.msra.mxu0 0
        %1170 = vmatpush.bf16.xpose.msra.mxu0 0
        %1171 = vmatpush.bf16.xpose.msra.mxu0 0
        %1172 = vmatpush.bf16.xpose.msra.mxu0 0
        %1173 = vmatpush.bf16.xpose.msra.mxu0 0
        %1174 = vmatpush.bf16.xpose.msra.mxu0 0
        %1175 = vmatpush.bf16.xpose.msra.mxu0 0
        %1176 = vmatpush.bf16.xpose.msra.mxu0 %v1167
        %1177 = vmatmul.bf16.gmra.mxu0 %v1164
        %v1178 = vpop.f32.mrf.mxu0
        %v1179 = vadd.f32 %v986, %v1178
        %v1180 = vpop.f32.mrf.mxu0
        %1181 = vdwg.mxu0
        %v1182 = vsel %vm994, %v1011, -inf
        %1183 = vmax.xlane.f32.xlu0 %v1182
        %v1184 = vpop.xlane.xlu0 %1183
        %v1185 = vsel %vm994, %v1035, -inf
        %1186 = vmax.xlane.f32.xlu0 %v1185
        %v1187 = vpop.xlane.xlu0 %1186
        %v1188 = vsel %vm994, %v1059, -inf
        %1189 = vmax.xlane.f32.xlu0 %v1188
        %v1190 = vpop.xlane.xlu0 %1189
        %v1191 = vsel %vm994, %v1083, -inf
        %1192 = vmax.xlane.f32.xlu0 %v1191
        %v1193 = vpop.xlane.xlu0 %1192
        %v1194 = vsel %vm994, %v1107, -inf
        %1195 = vmax.xlane.f32.xlu0 %v1194
        %v1196 = vpop.xlane.xlu0 %1195
        %v1197 = vsel %vm994, %v1131, -inf
        %1198 = vmax.xlane.f32.xlu0 %v1197
        %v1199 = vpop.xlane.xlu0 %1198
        %v1200 = vsel %vm994, %v1155, -inf
        %1201 = vmax.xlane.f32.xlu0 %v1200
        %v1202 = vpop.xlane.xlu0 %1201
        %v1203 = vsel %vm994, %v1179, -inf
        %1204 = vmax.xlane.f32.xlu0 %v1203
        %v1205 = vpop.xlane.xlu0 %1204
        %v1206 = vsub.f32 %v1011, %v1184
        %v1207 = vsub.f32 %v1035, %v1187
        %v1208 = vsub.f32 %v1059, %v1190
        %v1209 = vsub.f32 %v1083, %v1193
        %v1210 = vsub.f32 %v1107, %v1196
        %v1211 = vsub.f32 %v1131, %v1199
        %v1212 = vsub.f32 %v1155, %v1202
        %v1213 = vsub.f32 %v1179, %v1205
        %v1214 = vmul.f32 %v1206, 1.442695
        %v1215 = vpow.pop %v1214
        %v1216 = vmul.f32 %v1207, 1.442695
        %v1217 = vpow.pop %v1216
        %v1218 = vmul.f32 %v1208, 1.442695
        %v1219 = vpow.pop %v1218
        %v1220 = vmul.f32 %v1209, 1.442695
        %v1221 = vpow.pop %v1220
        %v1222 = vmul.f32 %v1210, 1.442695
        %v1223 = vpow.pop %v1222
        %v1224 = vmul.f32 %v1211, 1.442695
        %v1225 = vpow.pop %v1224
        %v1226 = vmul.f32 %v1212, 1.442695
        %v1227 = vpow.pop %v1226
        %v1228 = vmul.f32 %v1213, 1.442695
        %v1229 = vpow.pop %v1228
        %v1230 = vsel %vm994, %v1215, 0.0
        %1231 = vadd.xlane.f32.xlu0 %v1230
        %v1232 = vpop.xlane.xlu0 %1231
        %v1233 = vsel %vm994, %v1217, 0.0
        %1234 = vadd.xlane.f32.xlu0 %v1233
        %v1235 = vpop.xlane.xlu0 %1234
        %v1236 = vsel %vm994, %v1219, 0.0
        %1237 = vadd.xlane.f32.xlu0 %v1236
        %v1238 = vpop.xlane.xlu0 %1237
        %v1239 = vsel %vm994, %v1221, 0.0
        %1240 = vadd.xlane.f32.xlu0 %v1239
        %v1241 = vpop.xlane.xlu0 %1240
        %v1242 = vsel %vm994, %v1223, 0.0
        %1243 = vadd.xlane.f32.xlu0 %v1242
        %v1244 = vpop.xlane.xlu0 %1243
        %v1245 = vsel %vm994, %v1225, 0.0
        %1246 = vadd.xlane.f32.xlu0 %v1245
        %v1247 = vpop.xlane.xlu0 %1246
        %v1248 = vsel %vm994, %v1227, 0.0
        %1249 = vadd.xlane.f32.xlu0 %v1248
        %v1250 = vpop.xlane.xlu0 %1249
        %v1251 = vsel %vm994, %v1229, 0.0
        %1252 = vadd.xlane.f32.xlu0 %v1251
        %v1253 = vpop.xlane.xlu0 %1252
        %v1254 = vrcp.pop %v1232
        %v1255 = vrcp.pop %v1235
        %v1256 = vrcp.pop %v1238
        %v1257 = vrcp.pop %v1241
        %v1258 = vrcp.pop %v1244
        %v1259 = vrcp.pop %v1247
        %v1260 = vrcp.pop %v1250
        %v1261 = vrcp.pop %v1253
        %v1262 = vmul.f32 %v1215, %v1254
        %v1263 = vmul.f32 %v1217, %v1255
        %v1264 = vmul.f32 %v1219, %v1256
        %v1265 = vmul.f32 %v1221, %v1257
        %v1266 = vmul.f32 %v1223, %v1258
        %v1267 = vmul.f32 %v1225, %v1259
        %v1268 = vmul.f32 %v1227, %v1260
        %v1269 = vmul.f32 %v1229, %v1261
        %v1270 = vpack.c.bf16 %v1262, %v1262
        %v1271 = vpack.c.bf16 %v1263, %v1263
        %v1272 = vpack.c.bf16 %v1264, %v1264
        %v1273 = vpack.c.bf16 %v1265, %v1265
        %v1274 = vpack.c.bf16 %v1266, %v1266
        %v1275 = vpack.c.bf16 %v1267, %v1267
        %v1276 = vpack.c.bf16 %v1268, %v1268
        %v1277 = vpack.c.bf16 %v1269, %v1269
        %1278 = vrot.lane.b32.xlu0 %v991, 64
        %v1279 = vpop.permute.xlu0 %1278
        %v1281 = vsel %vm994, %v1270, 0
        %vm1283 = vcmask 1043456
        %v1285 = vsel %vm1283, %v1279, 0
        %1287 = vmatpush.bf16.msra.mxu0 0
        %1288 = vmatpush.bf16.msra.mxu0 0
        %1289 = vmatpush.bf16.msra.mxu0 0
        %1290 = vmatpush.bf16.msra.mxu0 0
        %1291 = vmatpush.bf16.msra.mxu0 0
        %1292 = vmatpush.bf16.msra.mxu0 0
        %1293 = vmatpush.bf16.msra.mxu0 0
        %1294 = vmatpush.bf16.msra.mxu0 %v1285
        %1295 = vmatmul.bf16.gmra.mxu0 %v1281
        %v1296 = vpop.f32.mrf.mxu0
        %v1297 = vadd.f32 0.0, %v1296
        %v1298 = vpop.f32.mrf.mxu0
        %1299 = vdwg.mxu0
        %1300 = vrot.lane.b32.xlu0 %v1016, 64
        %v1301 = vpop.permute.xlu0 %1300
        %v1303 = vsel %vm994, %v1271, 0
        %v1306 = vsel %vm1283, %v1301, 0
        %1308 = vmatpush.bf16.msra.mxu0 0
        %1309 = vmatpush.bf16.msra.mxu0 0
        %1310 = vmatpush.bf16.msra.mxu0 0
        %1311 = vmatpush.bf16.msra.mxu0 0
        %1312 = vmatpush.bf16.msra.mxu0 0
        %1313 = vmatpush.bf16.msra.mxu0 0
        %1314 = vmatpush.bf16.msra.mxu0 0
        %1315 = vmatpush.bf16.msra.mxu0 %v1306
        %1316 = vmatmul.bf16.gmra.mxu0 %v1303
        %v1317 = vpop.f32.mrf.mxu0
        %v1318 = vadd.f32 0.0, %v1317
        %v1319 = vpop.f32.mrf.mxu0
        %1320 = vdwg.mxu0
        %1321 = vrot.lane.b32.xlu0 %v1040, 64
        %v1322 = vpop.permute.xlu0 %1321
        %v1324 = vsel %vm994, %v1272, 0
        %v1327 = vsel %vm1283, %v1322, 0
        %1329 = vmatpush.bf16.msra.mxu0 0
        %1330 = vmatpush.bf16.msra.mxu0 0
        %1331 = vmatpush.bf16.msra.mxu0 0
        %1332 = vmatpush.bf16.msra.mxu0 0
        %1333 = vmatpush.bf16.msra.mxu0 0
        %1334 = vmatpush.bf16.msra.mxu0 0
        %1335 = vmatpush.bf16.msra.mxu0 0
        %1336 = vmatpush.bf16.msra.mxu0 %v1327
        %1337 = vmatmul.bf16.gmra.mxu0 %v1324
        %v1338 = vpop.f32.mrf.mxu0
        %v1339 = vadd.f32 0.0, %v1338
        %v1340 = vpop.f32.mrf.mxu0
        %1341 = vdwg.mxu0
        %1342 = vrot.lane.b32.xlu0 %v1064, 64
        %v1343 = vpop.permute.xlu0 %1342
        %v1345 = vsel %vm994, %v1273, 0
        %v1348 = vsel %vm1283, %v1343, 0
        %1350 = vmatpush.bf16.msra.mxu0 0
        %1351 = vmatpush.bf16.msra.mxu0 0
        %1352 = vmatpush.bf16.msra.mxu0 0
        %1353 = vmatpush.bf16.msra.mxu0 0
        %1354 = vmatpush.bf16.msra.mxu0 0
        %1355 = vmatpush.bf16.msra.mxu0 0
        %1356 = vmatpush.bf16.msra.mxu0 0
        %1357 = vmatpush.bf16.msra.mxu0 %v1348
        %1358 = vmatmul.bf16.gmra.mxu0 %v1345
        %v1359 = vpop.f32.mrf.mxu0
        %v1360 = vadd.f32 0.0, %v1359
        %v1361 = vpop.f32.mrf.mxu0
        %1362 = vdwg.mxu0
        %1363 = vrot.lane.b32.xlu0 %v1088, 64
        %v1364 = vpop.permute.xlu0 %1363
        %v1366 = vsel %vm994, %v1274, 0
        %v1369 = vsel %vm1283, %v1364, 0
        %1371 = vmatpush.bf16.msra.mxu0 0
        %1372 = vmatpush.bf16.msra.mxu0 0
        %1373 = vmatpush.bf16.msra.mxu0 0
        %1374 = vmatpush.bf16.msra.mxu0 0
        %1375 = vmatpush.bf16.msra.mxu0 0
        %1376 = vmatpush.bf16.msra.mxu0 0
        %1377 = vmatpush.bf16.msra.mxu0 0
        %1378 = vmatpush.bf16.msra.mxu0 %v1369
        %1379 = vmatmul.bf16.gmra.mxu0 %v1366
        %v1380 = vpop.f32.mrf.mxu0
        %v1381 = vadd.f32 0.0, %v1380
        %v1382 = vpop.f32.mrf.mxu0
        %1383 = vdwg.mxu0
        %1384 = vrot.lane.b32.xlu0 %v1112, 64
        %v1385 = vpop.permute.xlu0 %1384
        %v1387 = vsel %vm994, %v1275, 0
        %v1390 = vsel %vm1283, %v1385, 0
        %1392 = vmatpush.bf16.msra.mxu0 0
        %1393 = vmatpush.bf16.msra.mxu0 0
        %1394 = vmatpush.bf16.msra.mxu0 0
        %1395 = vmatpush.bf16.msra.mxu0 0
        %1396 = vmatpush.bf16.msra.mxu0 0
        %1397 = vmatpush.bf16.msra.mxu0 0
        %1398 = vmatpush.bf16.msra.mxu0 0
        %1399 = vmatpush.bf16.msra.mxu0 %v1390
        %1400 = vmatmul.bf16.gmra.mxu0 %v1387
        %v1401 = vpop.f32.mrf.mxu0
        %v1402 = vadd.f32 0.0, %v1401
        %v1403 = vpop.f32.mrf.mxu0
        %1404 = vdwg.mxu0
        %1405 = vrot.lane.b32.xlu0 %v1136, 64
        %v1406 = vpop.permute.xlu0 %1405
        %v1408 = vsel %vm994, %v1276, 0
        %v1411 = vsel %vm1283, %v1406, 0
        %1413 = vmatpush.bf16.msra.mxu0 0
        %1414 = vmatpush.bf16.msra.mxu0 0
        %1415 = vmatpush.bf16.msra.mxu0 0
        %1416 = vmatpush.bf16.msra.mxu0 0
        %1417 = vmatpush.bf16.msra.mxu0 0
        %1418 = vmatpush.bf16.msra.mxu0 0
        %1419 = vmatpush.bf16.msra.mxu0 0
        %1420 = vmatpush.bf16.msra.mxu0 %v1411
        %1421 = vmatmul.bf16.gmra.mxu0 %v1408
        %v1422 = vpop.f32.mrf.mxu0
        %v1423 = vadd.f32 0.0, %v1422
        %v1424 = vpop.f32.mrf.mxu0
        %1425 = vdwg.mxu0
        %1426 = vrot.lane.b32.xlu0 %v1160, 64
        %v1427 = vpop.permute.xlu0 %1426
        %v1429 = vsel %vm994, %v1277, 0
        %v1432 = vsel %vm1283, %v1427, 0
        %1434 = vmatpush.bf16.msra.mxu0 0
        %1435 = vmatpush.bf16.msra.mxu0 0
        %1436 = vmatpush.bf16.msra.mxu0 0
        %1437 = vmatpush.bf16.msra.mxu0 0
        %1438 = vmatpush.bf16.msra.mxu0 0
        %1439 = vmatpush.bf16.msra.mxu0 0
        %1440 = vmatpush.bf16.msra.mxu0 0
        %1441 = vmatpush.bf16.msra.mxu0 %v1432
        %1442 = vmatmul.bf16.gmra.mxu0 %v1429
        %v1443 = vpop.f32.mrf.mxu0
        %v1444 = vadd.f32 0.0, %v1443
        %v1445 = vpop.f32.mrf.mxu0
        %1446 = vdwg.mxu0
        %1448 = vrot.lane.b32.xlu0 %v1318, 8
        %v1449 = vpop.permute.xlu0 %1448
        %1452 = vrot.lane.b32.xlu0 %v1339, 16
        %v1453 = vpop.permute.xlu0 %1452
        %1456 = vrot.lane.b32.xlu0 %v1360, 24
        %v1457 = vpop.permute.xlu0 %1456
        %v1459 = vsel %vm994, %v1297, %v1449
        %vm1460 = vcmask 130048
        %v1461 = vsel %vm1460, %v1459, %v1453
        %vm1462 = vcmask 195584
        %v1463 = vsel %vm1462, %v1461, %v1457
        %1465 = vrot.lane.b32.xlu0 %v1402, 8
        %v1466 = vpop.permute.xlu0 %1465
        %1469 = vrot.lane.b32.xlu0 %v1423, 16
        %v1470 = vpop.permute.xlu0 %1469
        %1473 = vrot.lane.b32.xlu0 %v1444, 24
        %v1474 = vpop.permute.xlu0 %1473
        %v1476 = vsel %vm994, %v1381, %v1466
        %v1477 = vsel %vm1460, %v1476, %v1470
        %v1478 = vsel %vm1462, %v1477, %v1474
        %v1479 = vpack.c.bf16 %v1478, %v1463
        %v1480 = vld [vmem:[%s776] sm:$0xf]
        %v1481 = vld [vmem:[%s776 + $0x4] sm:$0xf]
        %v1482 = vld [vmem:[%s776 + $0x8] sm:$0xf]
        %v1483 = vld [vmem:[%s776 + $0xc] sm:$0xf]
        %v1484 = vld [vmem:[%s779] sm:$0x1]
        %v1486 = vperm.slane %v1484, 0
        %v1492 = vunpack.c.l.b16 %v1480
        %v1493 = vunpack.c.l.b16 %v1481
        %v1494 = vunpack.c.l.b16 %v1482
        %v1495 = vunpack.c.l.b16 %v1483
        %v1496 = vpack.c.b16 %v1493, %v1492
        %v1497 = vpack.c.b16 %v1495, %v1494
        %v1501 = vsel %vm823, %v1479, 0
        %1503 = vmatpush.bf16.msra.mxu0 0
        %1504 = vmatpush.bf16.msra.mxu0 0
        %1505 = vmatpush.bf16.msra.mxu0 0
        %1506 = vmatpush.bf16.msra.mxu0 0
        %1507 = vmatpush.bf16.msra.mxu0 0
        %1508 = vmatpush.bf16.msra.mxu0 0
        %1509 = vmatpush.bf16.msra.mxu0 %v1497
        %1510 = vmatpush.bf16.msra.mxu0 %v1496
        %1511 = vmatmul.bf16.gmra.mxu0 %v1501
        %v1512 = vpop.f32.mrf.mxu0
        %v1513 = vadd.f32 %v1486, %v1512
        %v1514 = vpop.f32.mrf.mxu0
        %v1515 = vadd.f32 %v1486, %v1514
        %1516 = vdwg.mxu0
        %v1517 = vadd.f32 %v813, %v1513
        %v1518 = vadd.f32 %v814, %v1515
        %v1519 = vld [vmem:[%s785] sm:$0x1]
        %v1520 = vld [vmem:[%s678] sm:$0x1]
        %v1521 = vsel %vm823, %v1517, 0.0
        %1522 = vadd.xlane.f32.xlu0 %v1521
        %v1523 = vpop.xlane.xlu0 %1522
        %v1524 = vsel %vm823, %v1518, 0.0
        %1525 = vadd.xlane.f32.xlu0 %v1524
        %v1526 = vpop.xlane.xlu0 %1525
        %v1527 = vmul.f32 %v1523, %v836
        %v1528 = vmul.f32 %v1526, %v836
        %v1529 = vsub.f32 %v1517, %v1527
        %v1530 = vsub.f32 %v1518, %v1528
        %v1531 = vmul.f32 %v1529, %v1529
        %v1532 = vmul.f32 %v1530, %v1530
        %v1533 = vsel %vm823, %v1531, 0.0
        %1534 = vadd.xlane.f32.xlu0 %v1533
        %v1535 = vpop.xlane.xlu0 %1534
        %v1536 = vsel %vm823, %v1532, 0.0
        %1537 = vadd.xlane.f32.xlu0 %v1536
        %v1538 = vpop.xlane.xlu0 %1537
        %v1539 = vmul.f32 %v1535, 0.032258064
        %v1540 = vmul.f32 %v1538, 0.032258064
        %v1542 = vperm.slane %v1519, 0
        %v1544 = vmul.f32 %v1542, %v1529
        %v1545 = vmul.f32 %v1542, %v1530
        %v1546 = vrsqrt.pop %v1539
        %v1547 = vmul.f32 %v1546, %v1539
        %v1548 = vmul.f32 %v1547, %v1546
        %v1549 = vmul.f32 0.5, %v1548
        %v1550 = vsub.f32 1.5, %v1549
        %v1551 = vmul.f32 %v1546, %v1550
        %v1552 = vmul.f32 %v1539, %v1551
        %vm1553 = vcmp.eq.f32.partialorder %v1539, inf
        %v1554 = vsel %vm1553, %v1539, %v1552
        %vm1555 = vcmp.eq.f32.partialorder %v1539, 0.0
        %v1556 = vand.u32 %v1539, 2147483648
        %v1557 = vsel %vm1555, %v1556, %v1554
        %v1558 = vrsqrt.pop %v1540
        %v1559 = vmul.f32 %v1558, %v1540
        %v1560 = vmul.f32 %v1559, %v1558
        %v1561 = vmul.f32 0.5, %v1560
        %v1562 = vsub.f32 1.5, %v1561
        %v1563 = vmul.f32 %v1558, %v1562
        %v1564 = vmul.f32 %v1540, %v1563
        %vm1565 = vcmp.eq.f32.partialorder %v1540, inf
        %v1566 = vsel %vm1565, %v1540, %v1564
        %vm1567 = vcmp.eq.f32.partialorder %v1540, 0.0
        %v1568 = vand.u32 %v1540, 2147483648
        %v1569 = vsel %vm1567, %v1568, %v1566
        %v1570 = vadd.f32 %v1557, 1e-06
        %v1571 = vadd.f32 %v1569, 1e-06
        %v1572 = vrcp.pop %v1570
        %v1573 = vmul.f32 %v1570, %v1572
        %v1574 = vsub.f32 1.0, %v1573
        %v1575 = vmul.f32 %v1572, %v1574
        %v1576 = vadd.f32 %v1572, %v1575
        %vm1577 = vweird.f32 %v1570
        %vm1578 = vweird.f32 %v1572
        %vm1579 = vmor %vm1577, %vm1578
        %v1580 = vsel %vm1579, %v1572, %v1576
        %v1581 = vand.u32 2147483647, %v1570
        %vm1582 = vcmp.eq.f32.partialorder %v1581, 8.507059e+37
        %v1583 = vand.u32 %v1570, 2147483648
        %v1584 = vor.u32 1.1754944e-38, %v1583
        %v1585 = vsel %vm1582, %v1584, %v1580
        %v1586 = vmul.f32 %v1544, %v1585
        %v1587 = vrcp.pop %v1571
        %v1588 = vmul.f32 %v1571, %v1587
        %v1589 = vsub.f32 1.0, %v1588
        %v1590 = vmul.f32 %v1587, %v1589
        %v1591 = vadd.f32 %v1587, %v1590
        %vm1592 = vweird.f32 %v1571
        %vm1593 = vweird.f32 %v1587
        %vm1594 = vmor %vm1592, %vm1593
        %v1595 = vsel %vm1594, %v1587, %v1591
        %v1596 = vand.u32 2147483647, %v1571
        %vm1597 = vcmp.eq.f32.partialorder %v1596, 8.507059e+37
        %v1598 = vand.u32 %v1571, 2147483648
        %v1599 = vor.u32 1.1754944e-38, %v1598
        %v1600 = vsel %vm1597, %v1599, %v1595
        %v1601 = vmul.f32 %v1545, %v1600
        %v1603 = vperm.slane %v1520, 0
        %v1605 = vadd.f32 %v1586, %v1603
        %v1606 = vadd.f32 %v1601, %v1603
        %v1607 = vpack.c.bf16 %v1606, %v1605
        %v1608 = vld [vmem:[%s790] sm:$0xf]
        %v1609 = vld [vmem:[%s790 + $0x4] sm:$0xf]
        %v1610 = vld [vmem:[%s790 + $0x8] sm:$0xf]
        %v1611 = vld [vmem:[%s790 + $0xc] sm:$0xf]
        %v1612 = vld [vmem:[%s793] sm:$0x1]
        %v1614 = vperm.slane %v1612, 0
        %v1620 = vunpack.c.l.b16 %v1608
        %v1621 = vunpack.c.l.b16 %v1609
        %v1622 = vunpack.c.l.b16 %v1610
        %v1623 = vunpack.c.l.b16 %v1611
        %v1624 = vpack.c.b16 %v1621, %v1620
        %v1625 = vpack.c.b16 %v1623, %v1622
        %v1629 = vsel %vm823, %v1607, 0
        %1631 = vmatpush.bf16.msra.mxu0 0
        %1632 = vmatpush.bf16.msra.mxu0 0
        %1633 = vmatpush.bf16.msra.mxu0 0
        %1634 = vmatpush.bf16.msra.mxu0 0
        %1635 = vmatpush.bf16.msra.mxu0 0
        %1636 = vmatpush.bf16.msra.mxu0 0
        %1637 = vmatpush.bf16.msra.mxu0 %v1625
        %1638 = vmatpush.bf16.msra.mxu0 %v1624
        %1639 = vmatmul.bf16.gmra.mxu0 %v1629
        %v1640 = vpop.f32.mrf.mxu0
        %v1641 = vadd.f32 %v1614, %v1640
        %v1642 = vpop.f32.mrf.mxu0
        %v1643 = vadd.f32 %v1614, %v1642
        %1644 = vdwg.mxu0
        %v1645 = vmax.f32 %v1641, 0.0
        %v1646 = vmax.f32 %v1643, 0.0
        %v1647 = vpack.c.bf16 %v1646, %v1645
        %v1648 = vld [vmem:[%s798] sm:$0xf]
        %v1649 = vld [vmem:[%s798 + $0x4] sm:$0xf]
        %v1650 = vld [vmem:[%s798 + $0x8] sm:$0xf]
        %v1651 = vld [vmem:[%s798 + $0xc] sm:$0xf]
        %v1652 = vld [vmem:[%s798 + $0x10] sm:$0xf]
        %v1653 = vld [vmem:[%s798 + $0x14] sm:$0xf]
        %v1654 = vld [vmem:[%s798 + $0x18] sm:$0xf]
        %v1655 = vld [vmem:[%s798 + $0x1c] sm:$0xf]
        %v1656 = vld [vmem:[%s801] sm:$0x1]
        %v1658 = vperm.slane %v1656, 0
        %v1668 = vunpack.c.l.b16 %v1648
        %v1669 = vunpack.c.l.b16 %v1649
        %v1670 = vunpack.c.l.b16 %v1650
        %v1671 = vunpack.c.l.b16 %v1651
        %v1672 = vunpack.c.l.b16 %v1652
        %v1673 = vunpack.c.l.b16 %v1653
        %v1674 = vunpack.c.l.b16 %v1654
        %v1675 = vunpack.c.l.b16 %v1655
        %v1676 = vpack.c.b16 %v1669, %v1668
        %v1677 = vpack.c.b16 %v1671, %v1670
        %v1678 = vpack.c.b16 %v1673, %v1672
        %v1679 = vpack.c.b16 %v1675, %v1674
        %vm1684 = vcmask 523264
        %v1686 = vsel %vm1684, %v1647, 0
        %1688 = vmatpush.bf16.msra.mxu0 0
        %1689 = vmatpush.bf16.msra.mxu0 0
        %1690 = vmatpush.bf16.msra.mxu0 0
        %1691 = vmatpush.bf16.msra.mxu0 0
        %1692 = vmatpush.bf16.msra.mxu0 %v1679
        %1693 = vmatpush.bf16.msra.mxu0 %v1678
        %1694 = vmatpush.bf16.msra.mxu0 %v1677
        %1695 = vmatpush.bf16.msra.mxu0 %v1676
        %1696 = vmatmul.bf16.gmra.mxu0 %v1686
        %v1697 = vpop.f32.mrf.mxu0
        %v1698 = vadd.f32 %v1658, %v1697
        %v1699 = vpop.f32.mrf.mxu0
        %v1700 = vadd.f32 %v1658, %v1699
        %1701 = vdwg.mxu0
        %v1702 = vadd.f32 %v1517, %v1698
        %v1703 = vadd.f32 %v1518, %v1700
        %1704 = vst.msk [vmem:[#allocation2] sm:$0xff] %vm823, %v1702
        %1705 = vst.msk [vmem:[#allocation2 + $0x8] sm:$0xff] %vm823, %v1703
        %p1706 = scmp.eq.s32.totalorder %s35, 1
        // Predicated region
        $region109: #{tpu_custom_call.1} parent=83 // pred_check
          %p1707 = pneg %p1706
        $region110: #{tpu_custom_call.1} parent=83 // pred_check_branch
          %1709 = sbr.rel (%p1707) target = $region112
        $region111: #{tpu_custom_call.1} parent=83 // pred_region
          %v1710 = vld [vmem:[%s14] sm:$0x1]
          %v1711 = vld [vmem:[%s15] sm:$0x1]
          %v1712 = vsel %vm823, %v1702, 0.0
          %1713 = vadd.xlane.f32.xlu0 %v1712
          %v1714 = vpop.xlane.xlu0 %1713
          %v1715 = vsel %vm823, %v1703, 0.0
          %1716 = vadd.xlane.f32.xlu0 %v1715
          %v1717 = vpop.xlane.xlu0 %1716
          %v1718 = vmul.f32 %v1714, %v836
          %v1719 = vmul.f32 %v1717, %v836
          %v1720 = vsub.f32 %v1702, %v1718
          %v1721 = vsub.f32 %v1703, %v1719
          %v1722 = vmul.f32 %v1720, %v1720
          %v1723 = vmul.f32 %v1721, %v1721
          %v1724 = vsel %vm823, %v1722, 0.0
          %1725 = vadd.xlane.f32.xlu0 %v1724
          %v1726 = vpop.xlane.xlu0 %1725
          %v1727 = vsel %vm823, %v1723, 0.0
          %1728 = vadd.xlane.f32.xlu0 %v1727
          %v1729 = vpop.xlane.xlu0 %1728
          %v1730 = vmul.f32 %v1726, 0.032258064
          %v1731 = vmul.f32 %v1729, 0.032258064
          %v1733 = vperm.slane %v1710, 0
          %v1735 = vmul.f32 %v1733, %v1720
          %v1736 = vmul.f32 %v1733, %v1721
          %v1737 = vrsqrt.pop %v1730
          %v1738 = vmul.f32 %v1737, %v1730
          %v1739 = vmul.f32 %v1738, %v1737
          %v1740 = vmul.f32 0.5, %v1739
          %v1741 = vsub.f32 1.5, %v1740
          %v1742 = vmul.f32 %v1737, %v1741
          %v1743 = vmul.f32 %v1730, %v1742
          %vm1744 = vcmp.eq.f32.partialorder %v1730, inf
          %v1745 = vsel %vm1744, %v1730, %v1743
          %vm1746 = vcmp.eq.f32.partialorder %v1730, 0.0
          %v1747 = vand.u32 %v1730, 2147483648
          %v1748 = vsel %vm1746, %v1747, %v1745
          %v1749 = vrsqrt.pop %v1731
          %v1750 = vmul.f32 %v1749, %v1731
          %v1751 = vmul.f32 %v1750, %v1749
          %v1752 = vmul.f32 0.5, %v1751
          %v1753 = vsub.f32 1.5, %v1752
          %v1754 = vmul.f32 %v1749, %v1753
          %v1755 = vmul.f32 %v1731, %v1754
          %vm1756 = vcmp.eq.f32.partialorder %v1731, inf
          %v1757 = vsel %vm1756, %v1731, %v1755
          %vm1758 = vcmp.eq.f32.partialorder %v1731, 0.0
          %v1759 = vand.u32 %v1731, 2147483648
          %v1760 = vsel %vm1758, %v1759, %v1757
          %v1761 = vadd.f32 %v1748, 1e-06
          %v1762 = vadd.f32 %v1760, 1e-06
          %v1763 = vrcp.pop %v1761
          %v1764 = vmul.f32 %v1761, %v1763
          %v1765 = vsub.f32 1.0, %v1764
          %v1766 = vmul.f32 %v1763, %v1765
          %v1767 = vadd.f32 %v1763, %v1766
          %vm1768 = vweird.f32 %v1761
          %vm1769 = vweird.f32 %v1763
          %vm1770 = vmor %vm1768, %vm1769
          %v1771 = vsel %vm1770, %v1763, %v1767
          %v1772 = vand.u32 2147483647, %v1761
          %vm1773 = vcmp.eq.f32.partialorder %v1772, 8.507059e+37
          %v1774 = vand.u32 %v1761, 2147483648
          %v1775 = vor.u32 1.1754944e-38, %v1774
          %v1776 = vsel %vm1773, %v1775, %v1771
          %v1777 = vmul.f32 %v1735, %v1776
          %v1778 = vrcp.pop %v1762
          %v1779 = vmul.f32 %v1762, %v1778
          %v1780 = vsub.f32 1.0, %v1779
          %v1781 = vmul.f32 %v1778, %v1780
          %v1782 = vadd.f32 %v1778, %v1781
          %vm1783 = vweird.f32 %v1762
          %vm1784 = vweird.f32 %v1778
          %vm1785 = vmor %vm1783, %vm1784
          %v1786 = vsel %vm1785, %v1778, %v1782
          %v1787 = vand.u32 2147483647, %v1762
          %vm1788 = vcmp.eq.f32.partialorder %v1787, 8.507059e+37
          %v1789 = vand.u32 %v1762, 2147483648
          %v1790 = vor.u32 1.1754944e-38, %v1789
          %v1791 = vsel %vm1788, %v1790, %v1786
          %v1792 = vmul.f32 %v1736, %v1791
          %v1794 = vperm.slane %v1711, 0
          %v1796 = vadd.f32 %v1777, %v1794
          %v1797 = vadd.f32 %v1792, %v1794
          %1798 = vst.msk [vmem:[#allocation11] sm:$0xff] %vm823, %v1796
          %1799 = vst.msk [vmem:[#allocation11 + $0x8] sm:$0xff] %vm823, %v1797
        $region112: #{tpu_custom_call.1} parent=83 // pred_fallthru
          _
        // Predicated region
        $region113: #{tpu_custom_call.1} parent=83 // pred_check
          %p1800 = pneg %p466
        $region114: #{tpu_custom_call.1} parent=83 // pred_check_branch
          %1802 = sbr.rel (%p1800) target = $region116
        $region115: #{tpu_custom_call.1} parent=83 // pred_region
          %s1803 = smul.u32 2, %s34
          %1805 = vsyncadd [#allocation5], 0
          %s1806 = smul.addr %s1803, 8
          %s1807 = scalar_lea.hbm %s16, %s1806
          %s1808 = sshll.u32 [#allocation11], 4
          %s1809 = int_to_ptr.vmem [resolvable:$true] %s1808
          %s1810 = sshll.u32 %s1807, 4
          %s1811 = int_to_ptr.hbm [resolvable:$true] %s1810
          %1816 = dma.vmem_to_hbm [thread:$0]  %s1809, 256, %s1811, [#allocation5], 128, 128, 8
        $region116: #{tpu_custom_call.1} parent=83 // pred_fallthru
          _
        // Predicated region
        $region117: #{tpu_custom_call.1} parent=83 // pred_check
          %p1817 = pneg %p466
        $region118: #{tpu_custom_call.1} parent=83 // pred_check_branch
          %1819 = sbr.rel (%p1817) target = $region120
        $region119: #{tpu_custom_call.1} parent=83 // pred_region
          %1821 = dma.done [#allocation5], 256
        $region120: #{tpu_custom_call.1} parent=83 // pred_fallthru
          _
      $region84: #{tpu_custom_call.1} parent=5 // pred_fallthru
        _
      %p1822 = scmp.le.s32.totalorder 2, %s25
      // Predicated region
      $region121: #{tpu_custom_call.1} parent=5 // pred_check
        %p1823 = pneg %p1822
      $region122: #{tpu_custom_call.1} parent=5 // pred_check_branch
        %1825 = sbr.rel (%p1823) target = $region124
      $region123: #{tpu_custom_call.1} parent=5 // pred_region
        %s1826 = ssub.s32 %s25, 2
      $region124: #{tpu_custom_call.1} parent=5 // pred_fallthru
        _
    $region6: #{tpu_custom_call.1} parent=1 // loop_footer
      %s29 = sadd.s32 1, %s25
    $region7: #{tpu_custom_call.1} parent=1 // loop_footer_branch
      %24 = sbr.rel target = $region3
    $region8: #{tpu_custom_call.1} parent=1 // loop_exit
      _
    %1827 = vsyncpa [#allocation4], 1
    %s1828 = scalar_lea.sflag [#allocation4], 1
    %1829 = vsyncpa %s1828, 1
    %1830 = vsyncpa [#allocation7], 1
    %1831 = vsyncpa [#allocation5], 1
    %s1832 = scalar_lea.sflag [#allocation5], 1
    %1833 = vsyncpa %s1832, 1

</llo_original>
